<compile_context>
chip_gen: v5e
topology: v5e:2x2
jax: 0.10.0
libtpu: 0.0.40
codegen_flags: <defaults>
</compile_context>

<pallas_src>
import functools

import jax
import jax.numpy as jnp
from jax import lax
from jax.experimental import pallas as pl
from jax.experimental.pallas import tpu as pltpu

EPS = 1e-5


# ---------------------------------------------------------------------------
# Fused kernel: conv1 -> BN1 -> ReLU -> conv2 (D-padded via masks) -> BN2 -> ReLU
# Everything is kept in the (channels, flattened-rows) orientation.
#   rows1 ordered (h1, n, d, w) with h1 in [0, H+2)   -> rows1 = (H+2)*N*D*W
#   rows2 ordered (h,  n, d, w) with h  in [0, H)     -> rows2 =  H   *N*D*W
# With H outermost, every conv2 tap (kd, kh) is a constant row offset
#   kh*(N*D*W) + (kd-1)*W  into the flat rows1 axis.
# ---------------------------------------------------------------------------
def _double_conv_kernel(p1_ref, w1t_ref, w2t_ref, g1_ref, be1_ref,
                        g2_ref, be2_ref, mlo_ref, mhi_ref, o_ref,
                        *, ndw, wdim):
    f32 = jnp.float32
    cmid = w1t_ref.shape[0]
    rows2 = o_ref.shape[1]

    # ---------------- conv1: (Cmid, 9*Cin) @ (9*Cin, rows1) ----------------
    # conv bias intentionally omitted: cancelled exactly by the train-mode
    # batch-mean subtraction below.
    y1 = jnp.dot(w1t_ref[...], p1_ref[...], preferred_element_type=f32)

    # ---------------- BN1 (two-pass batch stats) + ReLU --------------------
    mean1 = jnp.mean(y1, axis=1, keepdims=True)
    yc1 = y1 - mean1
    var1 = jnp.mean(yc1 * yc1, axis=1, keepdims=True)
    y1n = jnp.maximum(
        yc1 * lax.rsqrt(var1 + EPS) * g1_ref[...] + be1_ref[...], 0.0)

    # ---------------- conv2 patch: constant row-offset windows -------------
    # Pad the flat rows axis by W zeros on each side so the two extreme taps
    # stay in bounds (those elements are masked out anyway).
    zpad = jnp.zeros((cmid, wdim), f32)
    y1p = jnp.concatenate([zpad, y1n, zpad], axis=1)

    mlo = mlo_ref[...]            # (1, rows2): valid where output d >= 1
    mhi = mhi_ref[...]            # (1, rows2): valid where output d <= D-2
    slabs = []
    for kd in range(3):
        for kh in range(3):
            off = wdim + kh * ndw + (kd - 1) * wdim
            slab = y1p[:, off:off + rows2]          # (Cmid, rows2)
            if kd == 0:
                slab = slab * mlo                   # zero-pad D boundary
            elif kd == 2:
                slab = slab * mhi
            slabs.append(slab)
    # Sublane-axis stacking in 8-row chunks: tile-aligned, no lane shuffles.
    patch2 = jnp.concatenate(slabs, axis=0)         # (9*Cmid, rows2)

    # ---------------- conv2: (Cout, 9*Cmid) @ (9*Cmid, rows2) --------------
    y2 = jnp.dot(w2t_ref[...], patch2, preferred_element_type=f32)

    # ---------------- BN2 + ReLU, lane-dense store --------------------------
    mean2 = jnp.mean(y2, axis=1, keepdims=True)
    yc2 = y2 - mean2
    var2 = jnp.mean(yc2 * yc2, axis=1, keepdims=True)
    o_ref[...] = jnp.maximum(
        yc2 * lax.rsqrt(var2 + EPS) * g2_ref[...] + be2_ref[...], 0.0)


# ---------------------------------------------------------------------------
# Wrapper: NCDHW in/out; one Pallas launch for the whole DoubleConv.
# ---------------------------------------------------------------------------
def double_conv_forward(x_ncdhw, params):
    """x_ncdhw: (N, Cin, D, H, W) -> (N, Cout, D, H, W)."""
    w1, b1, g1, be1, w2, b2, g2, be2 = params
    del b1, b2  # conv biases cancel exactly under train-mode BatchNorm
    N, Cin, D, H, W = x_ncdhw.shape
    Cmid = w1.shape[-1]
    Cout = w2.shape[-1]

    Ho1 = H + 2                      # conv1 output H (pad 2, valid 3-tap)
    ndw = N * D * W
    rows1 = Ho1 * ndw
    rows2 = H * ndw

    # conv1 im2col slab, already transposed lane-dense: (9*Cin, rows1) with
    # rows ordered (h1, n, d, w) and row blocks ordered (kh, kw, ci).
    # Tiny (~300 KB): built by XLA so the kernel does zero input relayout.
    x = x_ncdhw.astype(jnp.float32)
    xp = jnp.pad(x, ((0, 0), (0, 0), (0, 0), (2, 2), (1, 1)))  # H+4, W+2
    taps = []
    for kh in range(3):
        for kw in range(3):
            win = xp[:, :, :, kh:kh + Ho1, kw:kw + W]     # (N,Cin,D,Ho1,W)
            win = jnp.transpose(win, (1, 3, 0, 2, 4))     # (Cin,Ho1,N,D,W)
            taps.append(win.reshape(Cin, rows1))
    patch1 = jnp.concatenate(taps, axis=0)                # (9*Cin, rows1)

    # Weights pre-transposed to (out_channels, K) im2col layout (tiny).
    w1t = jnp.transpose(w1.astype(jnp.float32).reshape(9 * Cin, Cmid))   # (Cmid, 9*Cin)
    w2t = jnp.transpose(w2.astype(jnp.float32).reshape(9 * Cmid, Cout))  # (Cout, 9*Cmid)

    # BatchNorm affine params as (C, 1) columns (broadcast over the row axis).
    g1c = g1.astype(jnp.float32).reshape(Cmid, 1)
    be1c = be1.astype(jnp.float32).reshape(Cmid, 1)
    g2c = g2.astype(jnp.float32).reshape(Cout, 1)
    be2c = be2.astype(jnp.float32).reshape(Cout, 1)

    # D-boundary validity masks for conv2 taps (depend only on output d).
    d_of_row = (jnp.arange(rows2, dtype=jnp.int32) // W) % D
    mlo = (d_of_row >= 1).astype(jnp.float32).reshape(1, rows2)
    mhi = (d_of_row <= D - 2).astype(jnp.float32).reshape(1, rows2)

    def full(shape):
        return pl.BlockSpec(shape, lambda i: tuple(0 for _ in shape))

    kernel = functools.partial(_double_conv_kernel, ndw=ndw, wdim=W)

    y2 = pl.pallas_call(
        kernel,
        out_shape=jax.ShapeDtypeStruct((Cout, rows2), jnp.float32),
        grid=(1,),
        in_specs=[full(patch1.shape),
                  full(w1t.shape), full(w2t.shape),
                  full(g1c.shape), full(be1c.shape),
                  full(g2c.shape), full(be2c.shape),
                  full(mlo.shape), full(mhi.shape)],
        out_specs=full((Cout, rows2)),
        compiler_params=pltpu.CompilerParams(
            dimension_semantics=("arbitrary",),
            # peak working set ~2 MiB; keep well under v7x's 64 MiB VMEM.
            vmem_limit_bytes=16 * 1024 * 1024),
    )(patch1, w1t, w2t, g1c, be1c, g2c, be2c, mlo, mhi)

    # (Cout, h, n, d, w) -> (N, Cout, D, H, W); tiny (54 KB) XLA transpose.
    return jnp.transpose(y2.reshape(Cout, H, N, D, W), (2, 0, 3, 1, 4))


# ---------------------------------------------------------------------------
# Plain-JAX reference (lax conv + batch-stats BN), bias included, for checking.
# ---------------------------------------------------------------------------
def _bn_relu_ref(y, gamma, beta):  # y: NCDHW, gamma/beta: (C,)
    mean = jnp.mean(y, axis=(0, 2, 3, 4), keepdims=True)
    var = jnp.mean(jnp.square(y - mean), axis=(0, 2, 3, 4), keepdims=True)
    yhat = (y - mean) * lax.rsqrt(var + EPS)
    g = gamma.reshape(1, -1, 1, 1, 1)
    b = beta.reshape(1, -1, 1, 1, 1)
    return jnp.maximum(yhat * g + b, 0.0)


def double_conv_ref(x_ncdhw, params):
    w1, b1, g1, be1, w2, b2, g2, be2 = params
    dn = ("NCDHW", "OIDHW", "NCDHW")
    w1_oi = jnp.transpose(w1, (4, 3, 0, 1, 2))
    w2_oi = jnp.transpose(w2, (4, 3, 0, 1, 2))
    y = lax.conv_general_dilated(x_ncdhw, w1_oi, (1, 1, 1),
                                 [(0, 0), (2, 2), (1, 1)],
                                 dimension_numbers=dn)
    y = y + b1.reshape(1, -1, 1, 1, 1)
    y = _bn_relu_ref(y, g1, be1)
    y = lax.conv_general_dilated(y, w2_oi, (1, 1, 1),
                                 [(1, 1), (0, 0), (0, 0)],
                                 dimension_numbers=dn)
    y = y + b2.reshape(1, -1, 1, 1, 1)
    y = _bn_relu_ref(y, g2, be2)
    return y


if __name__ == "__main__":
    # Small shapes consistent with the module: NCDHW = (2, 4, 6, 12, 12)
    N, Cin, D, H, W = 2, 4, 6, 12, 12
    Cout = 8
    Cmid = Cout  # mid_channels defaults to out_channels

    key = jax.random.PRNGKey(0)
    k = jax.random.split(key, 9)
    x = jax.random.normal(k[0], (N, Cin, D, H, W), jnp.float32)

    # Conv weights in (kD, kH, kW, Cin, Cout) layout; biases kept for the
    # reference path (they cancel under train-mode BN in the Pallas path).
    w1 = 0.1 * jax.random.normal(k[1], (1, 3, 3, Cin, Cmid), jnp.float32)
    b1 = 0.1 * jax.random.normal(k[2], (Cmid,), jnp.float32)
    w2 = 0.1 * jax.random.normal(k[3], (3, 3, 1, Cmid, Cout), jnp.float32)
    b2 = 0.1 * jax.random.normal(k[4], (Cout,), jnp.float32)
    # Non-trivial BatchNorm affine params to exercise the full path.
    g1 = 1.0 + 0.1 * jax.random.normal(k[5], (Cmid,), jnp.float32)
    be1 = 0.1 * jax.random.normal(k[6], (Cmid,), jnp.float32)
    g2 = 1.0 + 0.1 * jax.random.normal(k[7], (Cout,), jnp.float32)
    be2 = 0.1 * jax.random.normal(k[8], (Cout,), jnp.float32)

    params = (w1, b1, g1, be1, w2, b2, g2, be2)

    out = jax.jit(double_conv_forward)(x, params)
    out = jax.block_until_ready(out)

    ref = double_conv_ref(x, params)
    assert out.shape == (N, Cout, D, H, W), out.shape
    err = float(jnp.max(jnp.abs(out - ref)))
    assert jnp.allclose(out, ref, atol=2e-4, rtol=2e-4), err

    print("KERNEL_OK")
</pallas_src>

<mosaic_0001>
module attributes {stable_mosaic.version = 11 : i64} {
  func.func @_double_conv_kernel(%arg0: i32, %arg1: memref<36x2016xf32, #tpu.memory_space<vmem>>, %arg2: memref<8x36xf32, #tpu.memory_space<vmem>>, %arg3: memref<8x72xf32, #tpu.memory_space<vmem>>, %arg4: memref<8x1xf32, #tpu.memory_space<vmem>>, %arg5: memref<8x1xf32, #tpu.memory_space<vmem>>, %arg6: memref<8x1xf32, #tpu.memory_space<vmem>>, %arg7: memref<8x1xf32, #tpu.memory_space<vmem>>, %arg8: memref<1x1728xf32, #tpu.memory_space<vmem>>, %arg9: memref<1x1728xf32, #tpu.memory_space<vmem>>, %arg10: memref<8x1728xf32, #tpu.memory_space<vmem>>) attributes {dimension_semantics = [#tpu.dimension_semantics<arbitrary>], iteration_bounds = array<i64: 1>, scalar_prefetch = 0 : i64, scratch_operands = 0 : i64, tpu.core_type = #tpu.core_type<tc>, window_params = [{pipeline_mode = #tpu.pipeline_mode<synchronous>, transform_indices = @transform_0, window_bounds = array<i64: 36, 2016>}, {pipeline_mode = #tpu.pipeline_mode<synchronous>, transform_indices = @transform_1, window_bounds = array<i64: 8, 36>}, {pipeline_mode = #tpu.pipeline_mode<synchronous>, transform_indices = @transform_2, window_bounds = array<i64: 8, 72>}, {pipeline_mode = #tpu.pipeline_mode<synchronous>, transform_indices = @transform_3, window_bounds = array<i64: 8, 1>}, {pipeline_mode = #tpu.pipeline_mode<synchronous>, transform_indices = @transform_4, window_bounds = array<i64: 8, 1>}, {pipeline_mode = #tpu.pipeline_mode<synchronous>, transform_indices = @transform_5, window_bounds = array<i64: 8, 1>}, {pipeline_mode = #tpu.pipeline_mode<synchronous>, transform_indices = @transform_6, window_bounds = array<i64: 8, 1>}, {pipeline_mode = #tpu.pipeline_mode<synchronous>, transform_indices = @transform_7, window_bounds = array<i64: 1, 1728>}, {pipeline_mode = #tpu.pipeline_mode<synchronous>, transform_indices = @transform_8, window_bounds = array<i64: 1, 1728>}, {pipeline_mode = #tpu.pipeline_mode<synchronous>, transform_indices = @transform_9, window_bounds = array<i64: 8, 1728>}]} {
    %c0 = arith.constant 0 : index
    %c0_0 = arith.constant 0 : index
    %0 = vector.load %arg2[%c0, %c0_0] : memref<8x36xf32, #tpu.memory_space<vmem>>, vector<8x36xf32>
    %c0_1 = arith.constant 0 : index
    %c0_2 = arith.constant 0 : index
    %1 = vector.load %arg1[%c0_1, %c0_2] : memref<36x2016xf32, #tpu.memory_space<vmem>>, vector<36x2016xf32>
    %cst = arith.constant dense<0.000000e+00> : vector<8x2016xf32>
    %2 = tpu.matmul %0, %1, %cst {dimension_numbers = #tpu.dot_dimension_numbers<[1], [0], [0], [1], [0, 0, 1, 1], [], []>} : vector<8x36xf32>, vector<36x2016xf32>, vector<8x2016xf32> -> vector<8x2016xf32>
    %cst_3 = arith.constant dense<0.000000e+00> : vector<8xf32>
    %3 = vector.multi_reduction <add>, %2, %cst_3 [1] : vector<8x2016xf32> to vector<8xf32>
    %4 = vector.shape_cast %3 : vector<8xf32> to vector<8x1xf32>
    %cst_4 = arith.constant 2.016000e+03 : f32
    %5 = vector.broadcast %cst_4 : f32 to vector<8x1xf32>
    %6 = arith.divf %4, %5 : vector<8x1xf32>
    %7 = vector.broadcast %6 : vector<8x1xf32> to vector<8x2016xf32>
    %8 = arith.subf %2, %7 : vector<8x2016xf32>
    %9 = arith.mulf %8, %8 : vector<8x2016xf32>
    %cst_5 = arith.constant dense<0.000000e+00> : vector<8xf32>
    %10 = vector.multi_reduction <add>, %9, %cst_5 [1] : vector<8x2016xf32> to vector<8xf32>
    %11 = vector.shape_cast %10 : vector<8xf32> to vector<8x1xf32>
    %cst_6 = arith.constant 2.016000e+03 : f32
    %12 = vector.broadcast %cst_6 : f32 to vector<8x1xf32>
    %13 = arith.divf %11, %12 : vector<8x1xf32>
    %cst_7 = arith.constant 9.99999974E-6 : f32
    %14 = vector.broadcast %cst_7 : f32 to vector<8x1xf32>
    %15 = arith.addf %13, %14 : vector<8x1xf32>
    %16 = math.rsqrt %15 : vector<8x1xf32>
    %17 = vector.broadcast %16 : vector<8x1xf32> to vector<8x2016xf32>
    %18 = arith.mulf %8, %17 : vector<8x2016xf32>
    %c0_8 = arith.constant 0 : index
    %c0_9 = arith.constant 0 : index
    %19 = vector.load %arg4[%c0_8, %c0_9] : memref<8x1xf32, #tpu.memory_space<vmem>>, vector<8x1xf32>
    %20 = vector.broadcast %19 : vector<8x1xf32> to vector<8x2016xf32>
    %21 = arith.mulf %18, %20 : vector<8x2016xf32>
    %c0_10 = arith.constant 0 : index
    %c0_11 = arith.constant 0 : index
    %22 = vector.load %arg5[%c0_10, %c0_11] : memref<8x1xf32, #tpu.memory_space<vmem>>, vector<8x1xf32>
    %23 = vector.broadcast %22 : vector<8x1xf32> to vector<8x2016xf32>
    %24 = arith.addf %21, %23 : vector<8x2016xf32>
    %cst_12 = arith.constant 0.000000e+00 : f32
    %25 = vector.broadcast %cst_12 : f32 to vector<8x2016xf32>
    %26 = arith.maximumf %24, %25 : vector<8x2016xf32>
    %cst_13 = arith.constant 0.000000e+00 : f32
    %27 = vector.broadcast %cst_13 : f32 to vector<8x12xf32>
    %28 = tpu.concatenate %27, %26, %27 in 1 : vector<8x12xf32>, vector<8x2016xf32>, vector<8x12xf32> -> vector<8x2040xf32>
    %c0_14 = arith.constant 0 : index
    %c0_15 = arith.constant 0 : index
    %29 = vector.load %arg8[%c0_14, %c0_15] : memref<1x1728xf32, #tpu.memory_space<vmem>>, vector<1x1728xf32>
    %c0_16 = arith.constant 0 : index
    %c0_17 = arith.constant 0 : index
    %30 = vector.load %arg9[%c0_16, %c0_17] : memref<1x1728xf32, #tpu.memory_space<vmem>>, vector<1x1728xf32>
    %31 = vector.extract_strided_slice %28 {offsets = [0, 0], sizes = [8, 1728], strides = [1, 1]} : vector<8x2040xf32> to vector<8x1728xf32>
    %32 = vector.broadcast %29 : vector<1x1728xf32> to vector<8x1728xf32>
    %33 = arith.mulf %31, %32 : vector<8x1728xf32>
    %34 = vector.extract_strided_slice %28 {offsets = [0, 144], sizes = [8, 1728], strides = [1, 1]} : vector<8x2040xf32> to vector<8x1728xf32>
    %35 = vector.broadcast %29 : vector<1x1728xf32> to vector<8x1728xf32>
    %36 = arith.mulf %34, %35 : vector<8x1728xf32>
    %37 = vector.extract_strided_slice %28 {offsets = [0, 288], sizes = [8, 1728], strides = [1, 1]} : vector<8x2040xf32> to vector<8x1728xf32>
    %38 = vector.broadcast %29 : vector<1x1728xf32> to vector<8x1728xf32>
    %39 = arith.mulf %37, %38 : vector<8x1728xf32>
    %40 = vector.extract_strided_slice %28 {offsets = [0, 12], sizes = [8, 1728], strides = [1, 1]} : vector<8x2040xf32> to vector<8x1728xf32>
    %41 = vector.extract_strided_slice %28 {offsets = [0, 156], sizes = [8, 1728], strides = [1, 1]} : vector<8x2040xf32> to vector<8x1728xf32>
    %42 = vector.extract_strided_slice %28 {offsets = [0, 300], sizes = [8, 1728], strides = [1, 1]} : vector<8x2040xf32> to vector<8x1728xf32>
    %43 = vector.extract_strided_slice %28 {offsets = [0, 24], sizes = [8, 1728], strides = [1, 1]} : vector<8x2040xf32> to vector<8x1728xf32>
    %44 = vector.broadcast %30 : vector<1x1728xf32> to vector<8x1728xf32>
    %45 = arith.mulf %43, %44 : vector<8x1728xf32>
    %46 = vector.extract_strided_slice %28 {offsets = [0, 168], sizes = [8, 1728], strides = [1, 1]} : vector<8x2040xf32> to vector<8x1728xf32>
    %47 = vector.broadcast %30 : vector<1x1728xf32> to vector<8x1728xf32>
    %48 = arith.mulf %46, %47 : vector<8x1728xf32>
    %49 = vector.extract_strided_slice %28 {offsets = [0, 312], sizes = [8, 1728], strides = [1, 1]} : vector<8x2040xf32> to vector<8x1728xf32>
    %50 = vector.broadcast %30 : vector<1x1728xf32> to vector<8x1728xf32>
    %51 = arith.mulf %49, %50 : vector<8x1728xf32>
    %52 = tpu.concatenate %33, %36, %39, %40, %41, %42, %45, %48, %51 in 0 : vector<8x1728xf32>, vector<8x1728xf32>, vector<8x1728xf32>, vector<8x1728xf32>, vector<8x1728xf32>, vector<8x1728xf32>, vector<8x1728xf32>, vector<8x1728xf32>, vector<8x1728xf32> -> vector<72x1728xf32>
    %c0_18 = arith.constant 0 : index
    %c0_19 = arith.constant 0 : index
    %53 = vector.load %arg3[%c0_18, %c0_19] : memref<8x72xf32, #tpu.memory_space<vmem>>, vector<8x72xf32>
    %cst_20 = arith.constant dense<0.000000e+00> : vector<8x1728xf32>
    %54 = tpu.matmul %53, %52, %cst_20 {dimension_numbers = #tpu.dot_dimension_numbers<[1], [0], [0], [1], [0, 0, 1, 1], [], []>} : vector<8x72xf32>, vector<72x1728xf32>, vector<8x1728xf32> -> vector<8x1728xf32>
    %cst_21 = arith.constant dense<0.000000e+00> : vector<8xf32>
    %55 = vector.multi_reduction <add>, %54, %cst_21 [1] : vector<8x1728xf32> to vector<8xf32>
    %56 = vector.shape_cast %55 : vector<8xf32> to vector<8x1xf32>
    %cst_22 = arith.constant 1.728000e+03 : f32
    %57 = vector.broadcast %cst_22 : f32 to vector<8x1xf32>
    %58 = arith.divf %56, %57 : vector<8x1xf32>
    %59 = vector.broadcast %58 : vector<8x1xf32> to vector<8x1728xf32>
    %60 = arith.subf %54, %59 : vector<8x1728xf32>
    %61 = arith.mulf %60, %60 : vector<8x1728xf32>
    %cst_23 = arith.constant dense<0.000000e+00> : vector<8xf32>
    %62 = vector.multi_reduction <add>, %61, %cst_23 [1] : vector<8x1728xf32> to vector<8xf32>
    %63 = vector.shape_cast %62 : vector<8xf32> to vector<8x1xf32>
    %cst_24 = arith.constant 1.728000e+03 : f32
    %64 = vector.broadcast %cst_24 : f32 to vector<8x1xf32>
    %65 = arith.divf %63, %64 : vector<8x1xf32>
    %cst_25 = arith.constant 9.99999974E-6 : f32
    %66 = vector.broadcast %cst_25 : f32 to vector<8x1xf32>
    %67 = arith.addf %65, %66 : vector<8x1xf32>
    %68 = math.rsqrt %67 : vector<8x1xf32>
    %69 = vector.broadcast %68 : vector<8x1xf32> to vector<8x1728xf32>
    %70 = arith.mulf %60, %69 : vector<8x1728xf32>
    %c0_26 = arith.constant 0 : index
    %c0_27 = arith.constant 0 : index
    %71 = vector.load %arg6[%c0_26, %c0_27] : memref<8x1xf32, #tpu.memory_space<vmem>>, vector<8x1xf32>
    %72 = vector.broadcast %71 : vector<8x1xf32> to vector<8x1728xf32>
    %73 = arith.mulf %70, %72 : vector<8x1728xf32>
    %c0_28 = arith.constant 0 : index
    %c0_29 = arith.constant 0 : index
    %74 = vector.load %arg7[%c0_28, %c0_29] : memref<8x1xf32, #tpu.memory_space<vmem>>, vector<8x1xf32>
    %75 = vector.broadcast %74 : vector<8x1xf32> to vector<8x1728xf32>
    %76 = arith.addf %73, %75 : vector<8x1728xf32>
    %cst_30 = arith.constant 0.000000e+00 : f32
    %77 = vector.broadcast %cst_30 : f32 to vector<8x1728xf32>
    %78 = arith.maximumf %76, %77 : vector<8x1728xf32>
    %c0_31 = arith.constant 0 : index
    %c0_32 = arith.constant 0 : index
    %79 = vector.load %arg10[%c0_31, %c0_32] : memref<8x1728xf32, #tpu.memory_space<vmem>>, vector<8x1728xf32>
    tpu.vector_store %arg10[%c0_31, %c0_32], %78 {strides = array<i32>} : memref<8x1728xf32, #tpu.memory_space<vmem>>, vector<8x1728xf32>,
    return
  }
  func.func @transform_0(%arg0: i32) -> (i32, i32) {
    %c0_i32 = arith.constant 0 : i32
    %c0_i32_0 = arith.constant 0 : i32
    %c0_i32_1 = arith.constant 0 : i32
    return %c0_i32, %c0_i32_0 : i32, i32
  }
  func.func @transform_1(%arg0: i32) -> (i32, i32) {
    %c0_i32 = arith.constant 0 : i32
    %c0_i32_0 = arith.constant 0 : i32
    %c0_i32_1 = arith.constant 0 : i32
    return %c0_i32, %c0_i32_0 : i32, i32
  }
  func.func @transform_2(%arg0: i32) -> (i32, i32) {
    %c0_i32 = arith.constant 0 : i32
    %c0_i32_0 = arith.constant 0 : i32
    %c0_i32_1 = arith.constant 0 : i32
    return %c0_i32, %c0_i32_0 : i32, i32
  }
  func.func @transform_3(%arg0: i32) -> (i32, i32) {
    %c0_i32 = arith.constant 0 : i32
    %c0_i32_0 = arith.constant 0 : i32
    %c0_i32_1 = arith.constant 0 : i32
    return %c0_i32, %c0_i32_0 : i32, i32
  }
  func.func @transform_4(%arg0: i32) -> (i32, i32) {
    %c0_i32 = arith.constant 0 : i32
    %c0_i32_0 = arith.constant 0 : i32
    %c0_i32_1 = arith.constant 0 : i32
    return %c0_i32, %c0_i32_0 : i32, i32
  }
  func.func @transform_5(%arg0: i32) -> (i32, i32) {
    %c0_i32 = arith.constant 0 : i32
    %c0_i32_0 = arith.constant 0 : i32
    %c0_i32_1 = arith.constant 0 : i32
    return %c0_i32, %c0_i32_0 : i32, i32
  }
  func.func @transform_6(%arg0: i32) -> (i32, i32) {
    %c0_i32 = arith.constant 0 : i32
    %c0_i32_0 = arith.constant 0 : i32
    %c0_i32_1 = arith.constant 0 : i32
    return %c0_i32, %c0_i32_0 : i32, i32
  }
  func.func @transform_7(%arg0: i32) -> (i32, i32) {
    %c0_i32 = arith.constant 0 : i32
    %c0_i32_0 = arith.constant 0 : i32
    %c0_i32_1 = arith.constant 0 : i32
    return %c0_i32, %c0_i32_0 : i32, i32
  }
  func.func @transform_8(%arg0: i32) -> (i32, i32) {
    %c0_i32 = arith.constant 0 : i32
    %c0_i32_0 = arith.constant 0 : i32
    %c0_i32_1 = arith.constant 0 : i32
    return %c0_i32, %c0_i32_0 : i32, i32
  }
  func.func @transform_9(%arg0: i32) -> (i32, i32) {
    %c0_i32 = arith.constant 0 : i32
    %c0_i32_0 = arith.constant 0 : i32
    %c0_i32_1 = arith.constant 0 : i32
    return %c0_i32, %c0_i32_0 : i32, i32
  }
}

</mosaic_0001>

<llo_original>
// kernel: double_conv_forward.1
$region0: #{double_conv_forward.1}
  #allocation0 [shape = 'u32[]', space=smem, size = 0x4, offset = 0x4, fixed_abs, tag = 'smem constant byte address 0x4 - core index']
  #allocation1 [shape = 'u32[72,128]{1,0:T(1,128)}', space=vmem, size = 0x9000, scoped, tag = 'internal scratch']
  %s0 = inlined_call_operand.vmem [shape: f32[36,2016], index: 0, kind: input, shape index: {}]
  %s1 = inlined_call_operand.vmem [shape: f32[8,36], index: 1, kind: input, shape index: {}]
  %s2 = inlined_call_operand.vmem [shape: f32[8,72], index: 2, kind: input, shape index: {}]
  %s3 = inlined_call_operand.vmem [shape: f32[8,1], index: 3, kind: input, shape index: {}]
  %s4 = inlined_call_operand.vmem [shape: f32[8,1], index: 4, kind: input, shape index: {}]
  %s5 = inlined_call_operand.vmem [shape: f32[8,1], index: 5, kind: input, shape index: {}]
  %s6 = inlined_call_operand.vmem [shape: f32[8,1], index: 6, kind: input, shape index: {}]
  %s7 = inlined_call_operand.vmem [shape: f32[1,1728], index: 7, kind: input, shape index: {}]
  %s8 = inlined_call_operand.vmem [shape: f32[1,1728], index: 8, kind: input, shape index: {}]
  %s9 = inlined_call_operand.vmem [shape: f32[8,1728], index: 9, kind: output, shape index: {}]
  %s10 = sld [smem:[#allocation0]]
  $region46: #{double_conv_forward.1} parent=0
    _
  %s12 = ssub.s32 1, %s10
  %s13 = scalar_select 0, %s12, %s10
  // Predicated region
  $region2: #{double_conv_forward.1} parent=0 // pred_check
    _
  $region3: #{double_conv_forward.1} parent=0 // pred_check_branch
    %15 = sbr.rel (0) target = $region5
  $region4: #{double_conv_forward.1} parent=0 // pred_region
    _
  $region5: #{double_conv_forward.1} parent=0 // pred_fallthru
    _
  // Predicated region
  $region6: #{double_conv_forward.1} parent=0 // pred_check
    _
  $region7: #{double_conv_forward.1} parent=0 // pred_check_branch
    %17 = sbr.rel (0) target = $region9
  $region8: #{double_conv_forward.1} parent=0 // pred_region
    _
  $region9: #{double_conv_forward.1} parent=0 // pred_fallthru
    _
  // Predicated region
  $region10: #{double_conv_forward.1} parent=0 // pred_check
    _
  $region11: #{double_conv_forward.1} parent=0 // pred_check_branch
    %19 = sbr.rel (0) target = $region13
  $region12: #{double_conv_forward.1} parent=0 // pred_region
    _
  $region13: #{double_conv_forward.1} parent=0 // pred_fallthru
    _
  // Predicated region
  $region14: #{double_conv_forward.1} parent=0 // pred_check
    _
  $region15: #{double_conv_forward.1} parent=0 // pred_check_branch
    %21 = sbr.rel (0) target = $region17
  $region16: #{double_conv_forward.1} parent=0 // pred_region
    _
  $region17: #{double_conv_forward.1} parent=0 // pred_fallthru
    _
  // Predicated region
  $region18: #{double_conv_forward.1} parent=0 // pred_check
    _
  $region19: #{double_conv_forward.1} parent=0 // pred_check_branch
    %23 = sbr.rel (0) target = $region21
  $region20: #{double_conv_forward.1} parent=0 // pred_region
    _
  $region21: #{double_conv_forward.1} parent=0 // pred_fallthru
    _
  // Predicated region
  $region22: #{double_conv_forward.1} parent=0 // pred_check
    _
  $region23: #{double_conv_forward.1} parent=0 // pred_check_branch
    %25 = sbr.rel (0) target = $region25
  $region24: #{double_conv_forward.1} parent=0 // pred_region
    _
  $region25: #{double_conv_forward.1} parent=0 // pred_fallthru
    _
  // Predicated region
  $region26: #{double_conv_forward.1} parent=0 // pred_check
    _
  $region27: #{double_conv_forward.1} parent=0 // pred_check_branch
    %27 = sbr.rel (0) target = $region29
  $region28: #{double_conv_forward.1} parent=0 // pred_region
    _
  $region29: #{double_conv_forward.1} parent=0 // pred_fallthru
    _
  // Predicated region
  $region30: #{double_conv_forward.1} parent=0 // pred_check
    _
  $region31: #{double_conv_forward.1} parent=0 // pred_check_branch
    %29 = sbr.rel (0) target = $region33
  $region32: #{double_conv_forward.1} parent=0 // pred_region
    _
  $region33: #{double_conv_forward.1} parent=0 // pred_fallthru
    _
  // Predicated region
  $region34: #{double_conv_forward.1} parent=0 // pred_check
    _
  $region35: #{double_conv_forward.1} parent=0 // pred_check_branch
    %31 = sbr.rel (0) target = $region37
  $region36: #{double_conv_forward.1} parent=0 // pred_region
    _
  $region37: #{double_conv_forward.1} parent=0 // pred_fallthru
    _
  %v32 = vld [vmem:[%s1] sm:$0xff]
  %v33 = vld [vmem:[%s0] sm:$0xff]
  %v34 = vld [vmem:[%s0 + $0x8] sm:$0xff]
  %v35 = vld [vmem:[%s0 + $0x10] sm:$0xff]
  %v36 = vld [vmem:[%s0 + $0x18] sm:$0xff]
  %v37 = vld [vmem:[%s0 + $0x20] sm:$0xff]
  %v38 = vld [vmem:[%s0 + $0x28] sm:$0xff]
  %v39 = vld [vmem:[%s0 + $0x30] sm:$0xff]
  %v40 = vld [vmem:[%s0 + $0x38] sm:$0xff]
  %v41 = vld [vmem:[%s0 + $0x40] sm:$0xff]
  %v42 = vld [vmem:[%s0 + $0x48] sm:$0xff]
  %v43 = vld [vmem:[%s0 + $0x50] sm:$0xff]
  %v44 = vld [vmem:[%s0 + $0x58] sm:$0xff]
  %v45 = vld [vmem:[%s0 + $0x60] sm:$0xff]
  %v46 = vld [vmem:[%s0 + $0x68] sm:$0xff]
  %v47 = vld [vmem:[%s0 + $0x70] sm:$0xff]
  %v48 = vld [vmem:[%s0 + $0x78] sm:$0xff]
  %v49 = vld [vmem:[%s0 + $0x80] sm:$0xff]
  %v50 = vld [vmem:[%s0 + $0x88] sm:$0xff]
  %v51 = vld [vmem:[%s0 + $0x90] sm:$0xff]
  %v52 = vld [vmem:[%s0 + $0x98] sm:$0xff]
  %v53 = vld [vmem:[%s0 + $0xa0] sm:$0xff]
  %v54 = vld [vmem:[%s0 + $0xa8] sm:$0xff]
  %v55 = vld [vmem:[%s0 + $0xb0] sm:$0xff]
  %v56 = vld [vmem:[%s0 + $0xb8] sm:$0xff]
  %v57 = vld [vmem:[%s0 + $0xc0] sm:$0xff]
  %v58 = vld [vmem:[%s0 + $0xc8] sm:$0xff]
  %v59 = vld [vmem:[%s0 + $0xd0] sm:$0xff]
  %v60 = vld [vmem:[%s0 + $0xd8] sm:$0xff]
  %v61 = vld [vmem:[%s0 + $0xe0] sm:$0xff]
  %v62 = vld [vmem:[%s0 + $0xe8] sm:$0xff]
  %v63 = vld [vmem:[%s0 + $0xf0] sm:$0xff]
  %v64 = vld [vmem:[%s0 + $0xf8] sm:$0xff]
  %v65 = vld [vmem:[%s0 + $0x100] sm:$0xff]
  %v66 = vld [vmem:[%s0 + $0x108] sm:$0xff]
  %v67 = vld [vmem:[%s0 + $0x110] sm:$0xff]
  %v68 = vld [vmem:[%s0 + $0x118] sm:$0xff]
  %v69 = vld [vmem:[%s0 + $0x120] sm:$0xff]
  %v70 = vld [vmem:[%s0 + $0x128] sm:$0xff]
  %v71 = vld [vmem:[%s0 + $0x130] sm:$0xff]
  %v72 = vld [vmem:[%s0 + $0x138] sm:$0xff]
  %v73 = vld [vmem:[%s0 + $0x140] sm:$0xff]
  %v74 = vld [vmem:[%s0 + $0x148] sm:$0xff]
  %v75 = vld [vmem:[%s0 + $0x150] sm:$0xff]
  %v76 = vld [vmem:[%s0 + $0x158] sm:$0xff]
  %v77 = vld [vmem:[%s0 + $0x160] sm:$0xff]
  %v78 = vld [vmem:[%s0 + $0x168] sm:$0xff]
  %v79 = vld [vmem:[%s0 + $0x170] sm:$0xff]
  %v80 = vld [vmem:[%s0 + $0x178] sm:$0xff]
  %v81 = vld [vmem:[%s0 + $0x180] sm:$0xff]
  %v82 = vld [vmem:[%s0 + $0x188] sm:$0xff]
  %v83 = vld [vmem:[%s0 + $0x190] sm:$0xff]
  %v84 = vld [vmem:[%s0 + $0x198] sm:$0xff]
  %v85 = vld [vmem:[%s0 + $0x1a0] sm:$0xff]
  %v86 = vld [vmem:[%s0 + $0x1a8] sm:$0xff]
  %v87 = vld [vmem:[%s0 + $0x1b0] sm:$0xff]
  %v88 = vld [vmem:[%s0 + $0x1b8] sm:$0xff]
  %v89 = vld [vmem:[%s0 + $0x1c0] sm:$0xff]
  %v90 = vld [vmem:[%s0 + $0x1c8] sm:$0xff]
  %v91 = vld [vmem:[%s0 + $0x1d0] sm:$0xff]
  %v92 = vld [vmem:[%s0 + $0x1d8] sm:$0xff]
  %v93 = vld [vmem:[%s0 + $0x1e0] sm:$0xff]
  %v94 = vld [vmem:[%s0 + $0x1e8] sm:$0xff]
  %v95 = vld [vmem:[%s0 + $0x1f0] sm:$0xff]
  %v96 = vld [vmem:[%s0 + $0x1f8] sm:$0xff]
  %v97 = vld [vmem:[%s0 + $0x200] sm:$0xf]
  %v98 = vld [vmem:[%s0 + $0x208] sm:$0xf]
  %v99 = vld [vmem:[%s0 + $0x210] sm:$0xf]
  %v100 = vld [vmem:[%s0 + $0x218] sm:$0xf]
  %v101 = vld [vmem:[%s0 + $0x220] sm:$0xf]
  %v102 = vld [vmem:[%s0 + $0x228] sm:$0xf]
  %v103 = vld [vmem:[%s0 + $0x230] sm:$0xf]
  %v104 = vld [vmem:[%s0 + $0x238] sm:$0xf]
  %v105 = vld [vmem:[%s0 + $0x240] sm:$0xf]
  %v106 = vld [vmem:[%s0 + $0x248] sm:$0xf]
  %v107 = vld [vmem:[%s0 + $0x250] sm:$0xf]
  %v108 = vld [vmem:[%s0 + $0x258] sm:$0xf]
  %v109 = vld [vmem:[%s0 + $0x260] sm:$0xf]
  %v110 = vld [vmem:[%s0 + $0x268] sm:$0xf]
  %v111 = vld [vmem:[%s0 + $0x270] sm:$0xf]
  %v112 = vld [vmem:[%s0 + $0x278] sm:$0xf]
  %vm113 = vcmask 293888
  %v115 = vsel %vm113, %v32, 0
  %vm117 = vcmask 1043456
  %v119 = vsel %vm117, %v97, 0
  %v122 = vsel %vm117, %v98, 0
  %v125 = vsel %vm117, %v99, 0
  %v128 = vsel %vm117, %v100, 0
  %v131 = vsel %vm117, %v101, 0
  %v134 = vsel %vm117, %v102, 0
  %v137 = vsel %vm117, %v103, 0
  %v140 = vsel %vm117, %v104, 0
  %v143 = vsel %vm117, %v105, 0
  %v146 = vsel %vm117, %v106, 0
  %v149 = vsel %vm117, %v107, 0
  %v152 = vsel %vm117, %v108, 0
  %v155 = vsel %vm117, %v109, 0
  %v158 = vsel %vm117, %v110, 0
  %v161 = vsel %vm117, %v111, 0
  %v164 = vsel %vm117, %v112, 0
  %166 = vmatpush.msra.mxu0 0.0
  %167 = vmatpush.msra.mxu0 0.0
  %168 = vmatpush.msra.mxu0 0.0
  %169 = vmatpush.msra.mxu0 0.0
  %170 = vmatpush.msra.mxu0 0.0
  %171 = vmatpush.msra.mxu0 0.0
  %172 = vmatpush.msra.mxu0 0.0
  %173 = vmatpush.msra.mxu0 0.0
  %174 = vmatpush.msra.mxu0 0.0
  %175 = vmatpush.msra.mxu0 0.0
  %176 = vmatpush.msra.mxu0 0.0
  %177 = vmatpush.msra.mxu0 %v119
  %178 = vmatpush.msra.mxu0 %v81
  %179 = vmatpush.msra.mxu0 %v65
  %180 = vmatpush.msra.mxu0 %v49
  %181 = vmatpush.msra.mxu0 %v33
  %182 = vmatmul.f32.gmra.mxu0 %v115
  %v183 = vpop.f32.mrf.mxu0
  %v184 = vadd.f32 0.0, %v183
  %185 = vdwg.mxu0
  %186 = vmatpush.msra.mxu0 0.0
  %187 = vmatpush.msra.mxu0 0.0
  %188 = vmatpush.msra.mxu0 0.0
  %189 = vmatpush.msra.mxu0 0.0
  %190 = vmatpush.msra.mxu0 0.0
  %191 = vmatpush.msra.mxu0 0.0
  %192 = vmatpush.msra.mxu0 0.0
  %193 = vmatpush.msra.mxu0 0.0
  %194 = vmatpush.msra.mxu0 0.0
  %195 = vmatpush.msra.mxu0 0.0
  %196 = vmatpush.msra.mxu0 0.0
  %197 = vmatpush.msra.mxu0 %v122
  %198 = vmatpush.msra.mxu0 %v82
  %199 = vmatpush.msra.mxu0 %v66
  %200 = vmatpush.msra.mxu0 %v50
  %201 = vmatpush.msra.mxu0 %v34
  %202 = vmatmul.f32.gmra.mxu0 %v115
  %v203 = vpop.f32.mrf.mxu0
  %v204 = vadd.f32 0.0, %v203
  %205 = vdwg.mxu0
  %206 = vmatpush.msra.mxu0 0.0
  %207 = vmatpush.msra.mxu0 0.0
  %208 = vmatpush.msra.mxu0 0.0
  %209 = vmatpush.msra.mxu0 0.0
  %210 = vmatpush.msra.mxu0 0.0
  %211 = vmatpush.msra.mxu0 0.0
  %212 = vmatpush.msra.mxu0 0.0
  %213 = vmatpush.msra.mxu0 0.0
  %214 = vmatpush.msra.mxu0 0.0
  %215 = vmatpush.msra.mxu0 0.0
  %216 = vmatpush.msra.mxu0 0.0
  %217 = vmatpush.msra.mxu0 %v125
  %218 = vmatpush.msra.mxu0 %v83
  %219 = vmatpush.msra.mxu0 %v67
  %220 = vmatpush.msra.mxu0 %v51
  %221 = vmatpush.msra.mxu0 %v35
  %222 = vmatmul.f32.gmra.mxu0 %v115
  %v223 = vpop.f32.mrf.mxu0
  %v224 = vadd.f32 0.0, %v223
  %225 = vdwg.mxu0
  %226 = vmatpush.msra.mxu0 0.0
  %227 = vmatpush.msra.mxu0 0.0
  %228 = vmatpush.msra.mxu0 0.0
  %229 = vmatpush.msra.mxu0 0.0
  %230 = vmatpush.msra.mxu0 0.0
  %231 = vmatpush.msra.mxu0 0.0
  %232 = vmatpush.msra.mxu0 0.0
  %233 = vmatpush.msra.mxu0 0.0
  %234 = vmatpush.msra.mxu0 0.0
  %235 = vmatpush.msra.mxu0 0.0
  %236 = vmatpush.msra.mxu0 0.0
  %237 = vmatpush.msra.mxu0 %v128
  %238 = vmatpush.msra.mxu0 %v84
  %239 = vmatpush.msra.mxu0 %v68
  %240 = vmatpush.msra.mxu0 %v52
  %241 = vmatpush.msra.mxu0 %v36
  %242 = vmatmul.f32.gmra.mxu0 %v115
  %v243 = vpop.f32.mrf.mxu0
  %v244 = vadd.f32 0.0, %v243
  %245 = vdwg.mxu0
  %246 = vmatpush.msra.mxu0 0.0
  %247 = vmatpush.msra.mxu0 0.0
  %248 = vmatpush.msra.mxu0 0.0
  %249 = vmatpush.msra.mxu0 0.0
  %250 = vmatpush.msra.mxu0 0.0
  %251 = vmatpush.msra.mxu0 0.0
  %252 = vmatpush.msra.mxu0 0.0
  %253 = vmatpush.msra.mxu0 0.0
  %254 = vmatpush.msra.mxu0 0.0
  %255 = vmatpush.msra.mxu0 0.0
  %256 = vmatpush.msra.mxu0 0.0
  %257 = vmatpush.msra.mxu0 %v131
  %258 = vmatpush.msra.mxu0 %v85
  %259 = vmatpush.msra.mxu0 %v69
  %260 = vmatpush.msra.mxu0 %v53
  %261 = vmatpush.msra.mxu0 %v37
  %262 = vmatmul.f32.gmra.mxu0 %v115
  %v263 = vpop.f32.mrf.mxu0
  %v264 = vadd.f32 0.0, %v263
  %265 = vdwg.mxu0
  %266 = vmatpush.msra.mxu0 0.0
  %267 = vmatpush.msra.mxu0 0.0
  %268 = vmatpush.msra.mxu0 0.0
  %269 = vmatpush.msra.mxu0 0.0
  %270 = vmatpush.msra.mxu0 0.0
  %271 = vmatpush.msra.mxu0 0.0
  %272 = vmatpush.msra.mxu0 0.0
  %273 = vmatpush.msra.mxu0 0.0
  %274 = vmatpush.msra.mxu0 0.0
  %275 = vmatpush.msra.mxu0 0.0
  %276 = vmatpush.msra.mxu0 0.0
  %277 = vmatpush.msra.mxu0 %v134
  %278 = vmatpush.msra.mxu0 %v86
  %279 = vmatpush.msra.mxu0 %v70
  %280 = vmatpush.msra.mxu0 %v54
  %281 = vmatpush.msra.mxu0 %v38
  %282 = vmatmul.f32.gmra.mxu0 %v115
  %v283 = vpop.f32.mrf.mxu0
  %v284 = vadd.f32 0.0, %v283
  %285 = vdwg.mxu0
  %286 = vmatpush.msra.mxu0 0.0
  %287 = vmatpush.msra.mxu0 0.0
  %288 = vmatpush.msra.mxu0 0.0
  %289 = vmatpush.msra.mxu0 0.0
  %290 = vmatpush.msra.mxu0 0.0
  %291 = vmatpush.msra.mxu0 0.0
  %292 = vmatpush.msra.mxu0 0.0
  %293 = vmatpush.msra.mxu0 0.0
  %294 = vmatpush.msra.mxu0 0.0
  %295 = vmatpush.msra.mxu0 0.0
  %296 = vmatpush.msra.mxu0 0.0
  %297 = vmatpush.msra.mxu0 %v137
  %298 = vmatpush.msra.mxu0 %v87
  %299 = vmatpush.msra.mxu0 %v71
  %300 = vmatpush.msra.mxu0 %v55
  %301 = vmatpush.msra.mxu0 %v39
  %302 = vmatmul.f32.gmra.mxu0 %v115
  %v303 = vpop.f32.mrf.mxu0
  %v304 = vadd.f32 0.0, %v303
  %305 = vdwg.mxu0
  %306 = vmatpush.msra.mxu0 0.0
  %307 = vmatpush.msra.mxu0 0.0
  %308 = vmatpush.msra.mxu0 0.0
  %309 = vmatpush.msra.mxu0 0.0
  %310 = vmatpush.msra.mxu0 0.0
  %311 = vmatpush.msra.mxu0 0.0
  %312 = vmatpush.msra.mxu0 0.0
  %313 = vmatpush.msra.mxu0 0.0
  %314 = vmatpush.msra.mxu0 0.0
  %315 = vmatpush.msra.mxu0 0.0
  %316 = vmatpush.msra.mxu0 0.0
  %317 = vmatpush.msra.mxu0 %v140
  %318 = vmatpush.msra.mxu0 %v88
  %319 = vmatpush.msra.mxu0 %v72
  %320 = vmatpush.msra.mxu0 %v56
  %321 = vmatpush.msra.mxu0 %v40
  %322 = vmatmul.f32.gmra.mxu0 %v115
  %v323 = vpop.f32.mrf.mxu0
  %v324 = vadd.f32 0.0, %v323
  %325 = vdwg.mxu0
  %326 = vmatpush.msra.mxu0 0.0
  %327 = vmatpush.msra.mxu0 0.0
  %328 = vmatpush.msra.mxu0 0.0
  %329 = vmatpush.msra.mxu0 0.0
  %330 = vmatpush.msra.mxu0 0.0
  %331 = vmatpush.msra.mxu0 0.0
  %332 = vmatpush.msra.mxu0 0.0
  %333 = vmatpush.msra.mxu0 0.0
  %334 = vmatpush.msra.mxu0 0.0
  %335 = vmatpush.msra.mxu0 0.0
  %336 = vmatpush.msra.mxu0 0.0
  %337 = vmatpush.msra.mxu0 %v143
  %338 = vmatpush.msra.mxu0 %v89
  %339 = vmatpush.msra.mxu0 %v73
  %340 = vmatpush.msra.mxu0 %v57
  %341 = vmatpush.msra.mxu0 %v41
  %342 = vmatmul.f32.gmra.mxu0 %v115
  %v343 = vpop.f32.mrf.mxu0
  %v344 = vadd.f32 0.0, %v343
  %345 = vdwg.mxu0
  %346 = vmatpush.msra.mxu0 0.0
  %347 = vmatpush.msra.mxu0 0.0
  %348 = vmatpush.msra.mxu0 0.0
  %349 = vmatpush.msra.mxu0 0.0
  %350 = vmatpush.msra.mxu0 0.0
  %351 = vmatpush.msra.mxu0 0.0
  %352 = vmatpush.msra.mxu0 0.0
  %353 = vmatpush.msra.mxu0 0.0
  %354 = vmatpush.msra.mxu0 0.0
  %355 = vmatpush.msra.mxu0 0.0
  %356 = vmatpush.msra.mxu0 0.0
  %357 = vmatpush.msra.mxu0 %v146
  %358 = vmatpush.msra.mxu0 %v90
  %359 = vmatpush.msra.mxu0 %v74
  %360 = vmatpush.msra.mxu0 %v58
  %361 = vmatpush.msra.mxu0 %v42
  %362 = vmatmul.f32.gmra.mxu0 %v115
  %v363 = vpop.f32.mrf.mxu0
  %v364 = vadd.f32 0.0, %v363
  %365 = vdwg.mxu0
  %366 = vmatpush.msra.mxu0 0.0
  %367 = vmatpush.msra.mxu0 0.0
  %368 = vmatpush.msra.mxu0 0.0
  %369 = vmatpush.msra.mxu0 0.0
  %370 = vmatpush.msra.mxu0 0.0
  %371 = vmatpush.msra.mxu0 0.0
  %372 = vmatpush.msra.mxu0 0.0
  %373 = vmatpush.msra.mxu0 0.0
  %374 = vmatpush.msra.mxu0 0.0
  %375 = vmatpush.msra.mxu0 0.0
  %376 = vmatpush.msra.mxu0 0.0
  %377 = vmatpush.msra.mxu0 %v149
  %378 = vmatpush.msra.mxu0 %v91
  %379 = vmatpush.msra.mxu0 %v75
  %380 = vmatpush.msra.mxu0 %v59
  %381 = vmatpush.msra.mxu0 %v43
  %382 = vmatmul.f32.gmra.mxu0 %v115
  %v383 = vpop.f32.mrf.mxu0
  %v384 = vadd.f32 0.0, %v383
  %385 = vdwg.mxu0
  %386 = vmatpush.msra.mxu0 0.0
  %387 = vmatpush.msra.mxu0 0.0
  %388 = vmatpush.msra.mxu0 0.0
  %389 = vmatpush.msra.mxu0 0.0
  %390 = vmatpush.msra.mxu0 0.0
  %391 = vmatpush.msra.mxu0 0.0
  %392 = vmatpush.msra.mxu0 0.0
  %393 = vmatpush.msra.mxu0 0.0
  %394 = vmatpush.msra.mxu0 0.0
  %395 = vmatpush.msra.mxu0 0.0
  %396 = vmatpush.msra.mxu0 0.0
  %397 = vmatpush.msra.mxu0 %v152
  %398 = vmatpush.msra.mxu0 %v92
  %399 = vmatpush.msra.mxu0 %v76
  %400 = vmatpush.msra.mxu0 %v60
  %401 = vmatpush.msra.mxu0 %v44
  %402 = vmatmul.f32.gmra.mxu0 %v115
  %v403 = vpop.f32.mrf.mxu0
  %v404 = vadd.f32 0.0, %v403
  %405 = vdwg.mxu0
  %406 = vmatpush.msra.mxu0 0.0
  %407 = vmatpush.msra.mxu0 0.0
  %408 = vmatpush.msra.mxu0 0.0
  %409 = vmatpush.msra.mxu0 0.0
  %410 = vmatpush.msra.mxu0 0.0
  %411 = vmatpush.msra.mxu0 0.0
  %412 = vmatpush.msra.mxu0 0.0
  %413 = vmatpush.msra.mxu0 0.0
  %414 = vmatpush.msra.mxu0 0.0
  %415 = vmatpush.msra.mxu0 0.0
  %416 = vmatpush.msra.mxu0 0.0
  %417 = vmatpush.msra.mxu0 %v155
  %418 = vmatpush.msra.mxu0 %v93
  %419 = vmatpush.msra.mxu0 %v77
  %420 = vmatpush.msra.mxu0 %v61
  %421 = vmatpush.msra.mxu0 %v45
  %422 = vmatmul.f32.gmra.mxu0 %v115
  %v423 = vpop.f32.mrf.mxu0
  %v424 = vadd.f32 0.0, %v423
  %425 = vdwg.mxu0
  %426 = vmatpush.msra.mxu0 0.0
  %427 = vmatpush.msra.mxu0 0.0
  %428 = vmatpush.msra.mxu0 0.0
  %429 = vmatpush.msra.mxu0 0.0
  %430 = vmatpush.msra.mxu0 0.0
  %431 = vmatpush.msra.mxu0 0.0
  %432 = vmatpush.msra.mxu0 0.0
  %433 = vmatpush.msra.mxu0 0.0
  %434 = vmatpush.msra.mxu0 0.0
  %435 = vmatpush.msra.mxu0 0.0
  %436 = vmatpush.msra.mxu0 0.0
  %437 = vmatpush.msra.mxu0 %v158
  %438 = vmatpush.msra.mxu0 %v94
  %439 = vmatpush.msra.mxu0 %v78
  %440 = vmatpush.msra.mxu0 %v62
  %441 = vmatpush.msra.mxu0 %v46
  %442 = vmatmul.f32.gmra.mxu0 %v115
  %v443 = vpop.f32.mrf.mxu0
  %v444 = vadd.f32 0.0, %v443
  %445 = vdwg.mxu0
  %446 = vmatpush.msra.mxu0 0.0
  %447 = vmatpush.msra.mxu0 0.0
  %448 = vmatpush.msra.mxu0 0.0
  %449 = vmatpush.msra.mxu0 0.0
  %450 = vmatpush.msra.mxu0 0.0
  %451 = vmatpush.msra.mxu0 0.0
  %452 = vmatpush.msra.mxu0 0.0
  %453 = vmatpush.msra.mxu0 0.0
  %454 = vmatpush.msra.mxu0 0.0
  %455 = vmatpush.msra.mxu0 0.0
  %456 = vmatpush.msra.mxu0 0.0
  %457 = vmatpush.msra.mxu0 %v161
  %458 = vmatpush.msra.mxu0 %v95
  %459 = vmatpush.msra.mxu0 %v79
  %460 = vmatpush.msra.mxu0 %v63
  %461 = vmatpush.msra.mxu0 %v47
  %462 = vmatmul.f32.gmra.mxu0 %v115
  %v463 = vpop.f32.mrf.mxu0
  %v464 = vadd.f32 0.0, %v463
  %465 = vdwg.mxu0
  %466 = vmatpush.msra.mxu0 0.0
  %467 = vmatpush.msra.mxu0 0.0
  %468 = vmatpush.msra.mxu0 0.0
  %469 = vmatpush.msra.mxu0 0.0
  %470 = vmatpush.msra.mxu0 0.0
  %471 = vmatpush.msra.mxu0 0.0
  %472 = vmatpush.msra.mxu0 0.0
  %473 = vmatpush.msra.mxu0 0.0
  %474 = vmatpush.msra.mxu0 0.0
  %475 = vmatpush.msra.mxu0 0.0
  %476 = vmatpush.msra.mxu0 0.0
  %477 = vmatpush.msra.mxu0 %v164
  %478 = vmatpush.msra.mxu0 %v96
  %479 = vmatpush.msra.mxu0 %v80
  %480 = vmatpush.msra.mxu0 %v64
  %481 = vmatpush.msra.mxu0 %v48
  %482 = vmatmul.f32.gmra.mxu0 %v115
  %v483 = vpop.f32.mrf.mxu0
  %v484 = vadd.f32 0.0, %v483
  %485 = vdwg.mxu0
  %v486 = vadd.f32 %v184, %v204
  %v487 = vadd.f32 %v486, %v224
  %v488 = vadd.f32 %v487, %v244
  %v489 = vadd.f32 %v488, %v264
  %v490 = vadd.f32 %v489, %v284
  %v491 = vadd.f32 %v490, %v304
  %v492 = vadd.f32 %v491, %v324
  %v493 = vadd.f32 %v492, %v344
  %v494 = vadd.f32 %v493, %v364
  %v495 = vadd.f32 %v494, %v384
  %v496 = vadd.f32 %v495, %v404
  %v497 = vadd.f32 %v496, %v424
  %v498 = vadd.f32 %v497, %v444
  %v499 = vadd.f32 %v498, %v464
  %vm500 = vcmask 785408
  %v501 = vsel %vm500, %v484, 0.0
  %v502 = vadd.f32 %v499, %v501
  %503 = vadd.xlane.f32.xlu0 %v502
  %v504 = vpop.xlane.xlu0 %503
  %v505 = vrcp.pop 2016.0
  %v506 = vmul.f32 2016.0, %v505
  %v507 = vsub.f32 1.0, %v506
  %v508 = vmul.f32 %v505, %v507
  %v509 = vadd.f32 %v505, %v508
  %vm510 = vweird.f32 %v505
  %v511 = vsel %vm510, %v505, %v509
  %v512 = vmul.f32 %v504, %v511
  %v513 = vsub.f32 %v184, %v512
  %v514 = vsub.f32 %v204, %v512
  %v515 = vsub.f32 %v224, %v512
  %v516 = vsub.f32 %v244, %v512
  %v517 = vsub.f32 %v264, %v512
  %v518 = vsub.f32 %v284, %v512
  %v519 = vsub.f32 %v304, %v512
  %v520 = vsub.f32 %v324, %v512
  %v521 = vsub.f32 %v344, %v512
  %v522 = vsub.f32 %v364, %v512
  %v523 = vsub.f32 %v384, %v512
  %v524 = vsub.f32 %v404, %v512
  %v525 = vsub.f32 %v424, %v512
  %v526 = vsub.f32 %v444, %v512
  %v527 = vsub.f32 %v464, %v512
  %v528 = vsub.f32 %v484, %v512
  %v529 = vmul.f32 %v513, %v513
  %v530 = vmul.f32 %v514, %v514
  %v531 = vmul.f32 %v515, %v515
  %v532 = vmul.f32 %v516, %v516
  %v533 = vmul.f32 %v517, %v517
  %v534 = vmul.f32 %v518, %v518
  %v535 = vmul.f32 %v519, %v519
  %v536 = vmul.f32 %v520, %v520
  %v537 = vmul.f32 %v521, %v521
  %v538 = vmul.f32 %v522, %v522
  %v539 = vmul.f32 %v523, %v523
  %v540 = vmul.f32 %v524, %v524
  %v541 = vmul.f32 %v525, %v525
  %v542 = vmul.f32 %v526, %v526
  %v543 = vmul.f32 %v527, %v527
  %v544 = vmul.f32 %v528, %v528
  %v545 = vadd.f32 %v529, %v530
  %v546 = vadd.f32 %v545, %v531
  %v547 = vadd.f32 %v546, %v532
  %v548 = vadd.f32 %v547, %v533
  %v549 = vadd.f32 %v548, %v534
  %v550 = vadd.f32 %v549, %v535
  %v551 = vadd.f32 %v550, %v536
  %v552 = vadd.f32 %v551, %v537
  %v553 = vadd.f32 %v552, %v538
  %v554 = vadd.f32 %v553, %v539
  %v555 = vadd.f32 %v554, %v540
  %v556 = vadd.f32 %v555, %v541
  %v557 = vadd.f32 %v556, %v542
  %v558 = vadd.f32 %v557, %v543
  %v559 = vsel %vm500, %v544, 0.0
  %v560 = vadd.f32 %v558, %v559
  %561 = vadd.xlane.f32.xlu0 %v560
  %v562 = vpop.xlane.xlu0 %561
  %v563 = vmul.f32 %v562, %v511
  %v564 = vadd.f32 %v563, 1e-05
  %v565 = vrsqrt.pop %v564
  %v566 = vmul.f32 %v565, %v564
  %v567 = vmul.f32 %v566, %v565
  %v568 = vmul.f32 0.5, %v567
  %v569 = vsub.f32 1.5, %v568
  %v570 = vmul.f32 %v565, %v569
  %vm571 = vweird.f32 %v564
  %vm572 = vweird.f32 %v565
  %vm573 = vmor %vm571, %vm572
  %v574 = vsel %vm573, %v565, %v570
  %v575 = vmul.f32 %v513, %v574
  %v576 = vmul.f32 %v514, %v574
  %v577 = vmul.f32 %v515, %v574
  %v578 = vmul.f32 %v516, %v574
  %v579 = vmul.f32 %v517, %v574
  %v580 = vmul.f32 %v518, %v574
  %v581 = vmul.f32 %v519, %v574
  %v582 = vmul.f32 %v520, %v574
  %v583 = vmul.f32 %v521, %v574
  %v584 = vmul.f32 %v522, %v574
  %v585 = vmul.f32 %v523, %v574
  %v586 = vmul.f32 %v524, %v574
  %v587 = vmul.f32 %v525, %v574
  %v588 = vmul.f32 %v526, %v574
  %v589 = vmul.f32 %v527, %v574
  %v590 = vmul.f32 %v528, %v574
  %v591 = vld [vmem:[%s3] sm:$0xff]
  %593 = vset.pattern.permute.xlu0 0
  %594 = vperm.xlu0 %593, %v591
  %v595 = vpop.permute.xlu0 %594
  %v597 = vmul.f32 %v575, %v595
  %v598 = vmul.f32 %v576, %v595
  %v599 = vmul.f32 %v577, %v595
  %v600 = vmul.f32 %v578, %v595
  %v601 = vmul.f32 %v579, %v595
  %v602 = vmul.f32 %v580, %v595
  %v603 = vmul.f32 %v581, %v595
  %v604 = vmul.f32 %v582, %v595
  %v605 = vmul.f32 %v583, %v595
  %v606 = vmul.f32 %v584, %v595
  %v607 = vmul.f32 %v585, %v595
  %v608 = vmul.f32 %v586, %v595
  %v609 = vmul.f32 %v587, %v595
  %v610 = vmul.f32 %v588, %v595
  %v611 = vmul.f32 %v589, %v595
  %v612 = vmul.f32 %v590, %v595
  %v613 = vld [vmem:[%s4] sm:$0xff]
  %615 = vset.pattern.permute.xlu0 0
  %616 = vperm.xlu0 %615, %v613
  %v617 = vpop.permute.xlu0 %616
  %v619 = vadd.f32 %v597, %v617
  %v620 = vadd.f32 %v598, %v617
  %v621 = vadd.f32 %v599, %v617
  %v622 = vadd.f32 %v600, %v617
  %v623 = vadd.f32 %v601, %v617
  %v624 = vadd.f32 %v602, %v617
  %v625 = vadd.f32 %v603, %v617
  %v626 = vadd.f32 %v604, %v617
  %v627 = vadd.f32 %v605, %v617
  %v628 = vadd.f32 %v606, %v617
  %v629 = vadd.f32 %v607, %v617
  %v630 = vadd.f32 %v608, %v617
  %v631 = vadd.f32 %v609, %v617
  %v632 = vadd.f32 %v610, %v617
  %v633 = vadd.f32 %v611, %v617
  %v634 = vadd.f32 %v612, %v617
  %v635 = vmax.f32 %v619, 0.0
  %v636 = vmax.f32 %v620, 0.0
  %v637 = vmax.f32 %v621, 0.0
  %v638 = vmax.f32 %v622, 0.0
  %v639 = vmax.f32 %v623, 0.0
  %v640 = vmax.f32 %v624, 0.0
  %v641 = vmax.f32 %v625, 0.0
  %v642 = vmax.f32 %v626, 0.0
  %v643 = vmax.f32 %v627, 0.0
  %v644 = vmax.f32 %v628, 0.0
  %v645 = vmax.f32 %v629, 0.0
  %v646 = vmax.f32 %v630, 0.0
  %v647 = vmax.f32 %v631, 0.0
  %v648 = vmax.f32 %v632, 0.0
  %v649 = vmax.f32 %v633, 0.0
  %v650 = vmax.f32 %v634, 0.0
  %667 = vrot.lane.b32.xlu0 %v635, 12
  %v668 = vpop.permute.xlu0 %667
  %669 = vrot.lane.b32.xlu0 %v636, 12
  %v670 = vpop.permute.xlu0 %669
  %671 = vrot.lane.b32.xlu0 %v637, 12
  %v672 = vpop.permute.xlu0 %671
  %673 = vrot.lane.b32.xlu0 %v638, 12
  %v674 = vpop.permute.xlu0 %673
  %675 = vrot.lane.b32.xlu0 %v639, 12
  %v676 = vpop.permute.xlu0 %675
  %677 = vrot.lane.b32.xlu0 %v640, 12
  %v678 = vpop.permute.xlu0 %677
  %679 = vrot.lane.b32.xlu0 %v641, 12
  %v680 = vpop.permute.xlu0 %679
  %681 = vrot.lane.b32.xlu0 %v642, 12
  %v682 = vpop.permute.xlu0 %681
  %683 = vrot.lane.b32.xlu0 %v643, 12
  %v684 = vpop.permute.xlu0 %683
  %685 = vrot.lane.b32.xlu0 %v644, 12
  %v686 = vpop.permute.xlu0 %685
  %687 = vrot.lane.b32.xlu0 %v645, 12
  %v688 = vpop.permute.xlu0 %687
  %689 = vrot.lane.b32.xlu0 %v646, 12
  %v690 = vpop.permute.xlu0 %689
  %691 = vrot.lane.b32.xlu0 %v647, 12
  %v692 = vpop.permute.xlu0 %691
  %693 = vrot.lane.b32.xlu0 %v648, 12
  %v694 = vpop.permute.xlu0 %693
  %695 = vrot.lane.b32.xlu0 %v649, 12
  %v696 = vpop.permute.xlu0 %695
  %697 = vrot.lane.b32.xlu0 %v650, 12
  %v698 = vpop.permute.xlu0 %697
  %vm699 = vcmask 97280
  %v700 = vsel %vm699, %v668, %v670
  %v701 = vsel %vm699, %v670, %v672
  %v702 = vsel %vm699, %v672, %v674
  %v703 = vsel %vm699, %v674, %v676
  %v704 = vsel %vm699, %v676, %v678
  %v705 = vsel %vm699, %v678, %v680
  %v706 = vsel %vm699, %v680, %v682
  %v707 = vsel %vm699, %v682, %v684
  %v708 = vsel %vm699, %v684, %v686
  %v709 = vsel %vm699, %v686, %v688
  %v710 = vsel %vm699, %v688, %v690
  %v711 = vsel %vm699, %v690, %v692
  %v712 = vsel %vm699, %v692, %v694
  %v713 = vsel %vm699, %v694, %v696
  %v714 = vsel %vm699, %v696, %v698
  %v731 = vsel %vm699, 0.0, %v668
  %vm732 = vcmask 883712
  %v733 = vsel %vm732, %v714, 0.0
  %v734 = vld [vmem:[%s7] sm:$0xff]
  %v735 = vld [vmem:[%s7 + $0x8] sm:$0x3f]
  %v736 = vld [vmem:[%s8] sm:$0xff]
  %v737 = vld [vmem:[%s8 + $0x8] sm:$0x3f]
  %v740 = vperm.slane %v734, 0
  %v741 = vperm.slane %v734, 1
  %v742 = vperm.slane %v734, 2
  %v743 = vperm.slane %v734, 3
  %v744 = vperm.slane %v734, 4
  %v745 = vperm.slane %v734, 5
  %v746 = vperm.slane %v734, 6
  %v747 = vperm.slane %v734, 7
  %v748 = vperm.slane %v735, 0
  %v749 = vperm.slane %v735, 1
  %v750 = vperm.slane %v735, 2
  %v751 = vperm.slane %v735, 3
  %v752 = vperm.slane %v735, 4
  %v753 = vperm.slane %v735, 5
  %v768 = vmul.f32 %v731, %v740
  %v769 = vmul.f32 %v700, %v741
  %v770 = vmul.f32 %v701, %v742
  %v771 = vmul.f32 %v702, %v743
  %v772 = vmul.f32 %v703, %v744
  %v773 = vmul.f32 %v704, %v745
  %v774 = vmul.f32 %v705, %v746
  %v775 = vmul.f32 %v706, %v747
  %v776 = vmul.f32 %v707, %v748
  %v777 = vmul.f32 %v708, %v749
  %v778 = vmul.f32 %v709, %v750
  %v779 = vmul.f32 %v710, %v751
  %v780 = vmul.f32 %v711, %v752
  %v781 = vmul.f32 %v712, %v753
  %782 = vrot.lane.b32.xlu0 %v740, 16
  %v783 = vpop.permute.xlu0 %782
  %784 = vrot.lane.b32.xlu0 %v741, 16
  %v785 = vpop.permute.xlu0 %784
  %786 = vrot.lane.b32.xlu0 %v742, 16
  %v787 = vpop.permute.xlu0 %786
  %788 = vrot.lane.b32.xlu0 %v743, 16
  %v789 = vpop.permute.xlu0 %788
  %790 = vrot.lane.b32.xlu0 %v744, 16
  %v791 = vpop.permute.xlu0 %790
  %792 = vrot.lane.b32.xlu0 %v745, 16
  %v793 = vpop.permute.xlu0 %792
  %794 = vrot.lane.b32.xlu0 %v746, 16
  %v795 = vpop.permute.xlu0 %794
  %796 = vrot.lane.b32.xlu0 %v747, 16
  %v797 = vpop.permute.xlu0 %796
  %798 = vrot.lane.b32.xlu0 %v748, 16
  %v799 = vpop.permute.xlu0 %798
  %800 = vrot.lane.b32.xlu0 %v749, 16
  %v801 = vpop.permute.xlu0 %800
  %802 = vrot.lane.b32.xlu0 %v750, 16
  %v803 = vpop.permute.xlu0 %802
  %804 = vrot.lane.b32.xlu0 %v751, 16
  %v805 = vpop.permute.xlu0 %804
  %806 = vrot.lane.b32.xlu0 %v752, 16
  %v807 = vpop.permute.xlu0 %806
  %808 = vrot.lane.b32.xlu0 %v753, 16
  %v809 = vpop.permute.xlu0 %808
  %vm810 = vcmask 130048
  %v811 = vsel %vm810, %v783, %v785
  %v812 = vsel %vm810, %v785, %v787
  %v813 = vsel %vm810, %v787, %v789
  %v814 = vsel %vm810, %v789, %v791
  %v815 = vsel %vm810, %v791, %v793
  %v816 = vsel %vm810, %v793, %v795
  %v817 = vsel %vm810, %v795, %v797
  %v818 = vsel %vm810, %v797, %v799
  %v819 = vsel %vm810, %v799, %v801
  %v820 = vsel %vm810, %v801, %v803
  %v821 = vsel %vm810, %v803, %v805
  %v822 = vsel %vm810, %v805, %v807
  %v823 = vsel %vm810, %v807, %v809
  %v838 = vmul.f32 %v700, %v783
  %v839 = vmul.f32 %v701, %v811
  %v840 = vmul.f32 %v702, %v812
  %v841 = vmul.f32 %v703, %v813
  %v842 = vmul.f32 %v704, %v814
  %v843 = vmul.f32 %v705, %v815
  %v844 = vmul.f32 %v706, %v816
  %v845 = vmul.f32 %v707, %v817
  %v846 = vmul.f32 %v708, %v818
  %v847 = vmul.f32 %v709, %v819
  %v848 = vmul.f32 %v710, %v820
  %v849 = vmul.f32 %v711, %v821
  %v850 = vmul.f32 %v712, %v822
  %v851 = vmul.f32 %v713, %v823
  %852 = vrot.lane.b32.xlu0 %v740, 32
  %v853 = vpop.permute.xlu0 %852
  %854 = vrot.lane.b32.xlu0 %v741, 32
  %v855 = vpop.permute.xlu0 %854
  %856 = vrot.lane.b32.xlu0 %v742, 32
  %v857 = vpop.permute.xlu0 %856
  %858 = vrot.lane.b32.xlu0 %v743, 32
  %v859 = vpop.permute.xlu0 %858
  %860 = vrot.lane.b32.xlu0 %v744, 32
  %v861 = vpop.permute.xlu0 %860
  %862 = vrot.lane.b32.xlu0 %v745, 32
  %v863 = vpop.permute.xlu0 %862
  %864 = vrot.lane.b32.xlu0 %v746, 32
  %v865 = vpop.permute.xlu0 %864
  %866 = vrot.lane.b32.xlu0 %v747, 32
  %v867 = vpop.permute.xlu0 %866
  %868 = vrot.lane.b32.xlu0 %v748, 32
  %v869 = vpop.permute.xlu0 %868
  %870 = vrot.lane.b32.xlu0 %v749, 32
  %v871 = vpop.permute.xlu0 %870
  %872 = vrot.lane.b32.xlu0 %v750, 32
  %v873 = vpop.permute.xlu0 %872
  %874 = vrot.lane.b32.xlu0 %v751, 32
  %v875 = vpop.permute.xlu0 %874
  %876 = vrot.lane.b32.xlu0 %v752, 32
  %v877 = vpop.permute.xlu0 %876
  %878 = vrot.lane.b32.xlu0 %v753, 32
  %v879 = vpop.permute.xlu0 %878
  %vm880 = vcmask 261120
  %v881 = vsel %vm880, %v853, %v855
  %v882 = vsel %vm880, %v855, %v857
  %v883 = vsel %vm880, %v857, %v859
  %v884 = vsel %vm880, %v859, %v861
  %v885 = vsel %vm880, %v861, %v863
  %v886 = vsel %vm880, %v863, %v865
  %v887 = vsel %vm880, %v865, %v867
  %v888 = vsel %vm880, %v867, %v869
  %v889 = vsel %vm880, %v869, %v871
  %v890 = vsel %vm880, %v871, %v873
  %v891 = vsel %vm880, %v873, %v875
  %v892 = vsel %vm880, %v875, %v877
  %v893 = vsel %vm880, %v877, %v879
  %v908 = vmul.f32 %v701, %v853
  %v909 = vmul.f32 %v702, %v881
  %v910 = vmul.f32 %v703, %v882
  %v911 = vmul.f32 %v704, %v883
  %v912 = vmul.f32 %v705, %v884
  %v913 = vmul.f32 %v706, %v885
  %v914 = vmul.f32 %v707, %v886
  %v915 = vmul.f32 %v708, %v887
  %v916 = vmul.f32 %v709, %v888
  %v917 = vmul.f32 %v710, %v889
  %v918 = vmul.f32 %v711, %v890
  %v919 = vmul.f32 %v712, %v891
  %v920 = vmul.f32 %v713, %v892
  %v921 = vmul.f32 %v733, %v893
  %v924 = vperm.slane %v736, 0
  %v925 = vperm.slane %v736, 1
  %v926 = vperm.slane %v736, 2
  %v927 = vperm.slane %v736, 3
  %v928 = vperm.slane %v736, 4
  %v929 = vperm.slane %v736, 5
  %v930 = vperm.slane %v736, 6
  %v931 = vperm.slane %v736, 7
  %v932 = vperm.slane %v737, 0
  %v933 = vperm.slane %v737, 1
  %v934 = vperm.slane %v737, 2
  %v935 = vperm.slane %v737, 3
  %v936 = vperm.slane %v737, 4
  %v937 = vperm.slane %v737, 5
  %938 = vrot.lane.b32.xlu0 %v924, 24
  %v939 = vpop.permute.xlu0 %938
  %940 = vrot.lane.b32.xlu0 %v925, 24
  %v941 = vpop.permute.xlu0 %940
  %942 = vrot.lane.b32.xlu0 %v926, 24
  %v943 = vpop.permute.xlu0 %942
  %944 = vrot.lane.b32.xlu0 %v927, 24
  %v945 = vpop.permute.xlu0 %944
  %946 = vrot.lane.b32.xlu0 %v928, 24
  %v947 = vpop.permute.xlu0 %946
  %948 = vrot.lane.b32.xlu0 %v929, 24
  %v949 = vpop.permute.xlu0 %948
  %950 = vrot.lane.b32.xlu0 %v930, 24
  %v951 = vpop.permute.xlu0 %950
  %952 = vrot.lane.b32.xlu0 %v931, 24
  %v953 = vpop.permute.xlu0 %952
  %954 = vrot.lane.b32.xlu0 %v932, 24
  %v955 = vpop.permute.xlu0 %954
  %956 = vrot.lane.b32.xlu0 %v933, 24
  %v957 = vpop.permute.xlu0 %956
  %958 = vrot.lane.b32.xlu0 %v934, 24
  %v959 = vpop.permute.xlu0 %958
  %960 = vrot.lane.b32.xlu0 %v935, 24
  %v961 = vpop.permute.xlu0 %960
  %962 = vrot.lane.b32.xlu0 %v936, 24
  %v963 = vpop.permute.xlu0 %962
  %964 = vrot.lane.b32.xlu0 %v937, 24
  %v965 = vpop.permute.xlu0 %964
  %vm966 = vcmask 195584
  %v967 = vsel %vm966, %v939, %v941
  %v968 = vsel %vm966, %v941, %v943
  %v969 = vsel %vm966, %v943, %v945
  %v970 = vsel %vm966, %v945, %v947
  %v971 = vsel %vm966, %v947, %v949
  %v972 = vsel %vm966, %v949, %v951
  %v973 = vsel %vm966, %v951, %v953
  %v974 = vsel %vm966, %v953, %v955
  %v975 = vsel %vm966, %v955, %v957
  %v976 = vsel %vm966, %v957, %v959
  %v977 = vsel %vm966, %v959, %v961
  %v978 = vsel %vm966, %v961, %v963
  %v979 = vsel %vm966, %v963, %v965
  %v994 = vmul.f32 %v731, %v939
  %v995 = vmul.f32 %v700, %v967
  %v996 = vmul.f32 %v701, %v968
  %v997 = vmul.f32 %v702, %v969
  %v998 = vmul.f32 %v703, %v970
  %v999 = vmul.f32 %v704, %v971
  %v1000 = vmul.f32 %v705, %v972
  %v1001 = vmul.f32 %v706, %v973
  %v1002 = vmul.f32 %v707, %v974
  %v1003 = vmul.f32 %v708, %v975
  %v1004 = vmul.f32 %v709, %v976
  %v1005 = vmul.f32 %v710, %v977
  %v1006 = vmul.f32 %v711, %v978
  %v1007 = vmul.f32 %v712, %v979
  %1008 = vrot.lane.b32.xlu0 %v924, 40
  %v1009 = vpop.permute.xlu0 %1008
  %1010 = vrot.lane.b32.xlu0 %v925, 40
  %v1011 = vpop.permute.xlu0 %1010
  %1012 = vrot.lane.b32.xlu0 %v926, 40
  %v1013 = vpop.permute.xlu0 %1012
  %1014 = vrot.lane.b32.xlu0 %v927, 40
  %v1015 = vpop.permute.xlu0 %1014
  %1016 = vrot.lane.b32.xlu0 %v928, 40
  %v1017 = vpop.permute.xlu0 %1016
  %1018 = vrot.lane.b32.xlu0 %v929, 40
  %v1019 = vpop.permute.xlu0 %1018
  %1020 = vrot.lane.b32.xlu0 %v930, 40
  %v1021 = vpop.permute.xlu0 %1020
  %1022 = vrot.lane.b32.xlu0 %v931, 40
  %v1023 = vpop.permute.xlu0 %1022
  %1024 = vrot.lane.b32.xlu0 %v932, 40
  %v1025 = vpop.permute.xlu0 %1024
  %1026 = vrot.lane.b32.xlu0 %v933, 40
  %v1027 = vpop.permute.xlu0 %1026
  %1028 = vrot.lane.b32.xlu0 %v934, 40
  %v1029 = vpop.permute.xlu0 %1028
  %1030 = vrot.lane.b32.xlu0 %v935, 40
  %v1031 = vpop.permute.xlu0 %1030
  %1032 = vrot.lane.b32.xlu0 %v936, 40
  %v1033 = vpop.permute.xlu0 %1032
  %1034 = vrot.lane.b32.xlu0 %v937, 40
  %v1035 = vpop.permute.xlu0 %1034
  %vm1036 = vcmask 326656
  %v1037 = vsel %vm1036, %v1009, %v1011
  %v1038 = vsel %vm1036, %v1011, %v1013
  %v1039 = vsel %vm1036, %v1013, %v1015
  %v1040 = vsel %vm1036, %v1015, %v1017
  %v1041 = vsel %vm1036, %v1017, %v1019
  %v1042 = vsel %vm1036, %v1019, %v1021
  %v1043 = vsel %vm1036, %v1021, %v1023
  %v1044 = vsel %vm1036, %v1023, %v1025
  %v1045 = vsel %vm1036, %v1025, %v1027
  %v1046 = vsel %vm1036, %v1027, %v1029
  %v1047 = vsel %vm1036, %v1029, %v1031
  %v1048 = vsel %vm1036, %v1031, %v1033
  %v1049 = vsel %vm1036, %v1033, %v1035
  %v1064 = vmul.f32 %v700, %v1009
  %v1065 = vmul.f32 %v701, %v1037
  %v1066 = vmul.f32 %v702, %v1038
  %v1067 = vmul.f32 %v703, %v1039
  %v1068 = vmul.f32 %v704, %v1040
  %v1069 = vmul.f32 %v705, %v1041
  %v1070 = vmul.f32 %v706, %v1042
  %v1071 = vmul.f32 %v707, %v1043
  %v1072 = vmul.f32 %v708, %v1044
  %v1073 = vmul.f32 %v709, %v1045
  %v1074 = vmul.f32 %v710, %v1046
  %v1075 = vmul.f32 %v711, %v1047
  %v1076 = vmul.f32 %v712, %v1048
  %v1077 = vmul.f32 %v713, %v1049
  %1078 = vrot.lane.b32.xlu0 %v924, 56
  %v1079 = vpop.permute.xlu0 %1078
  %1080 = vrot.lane.b32.xlu0 %v925, 56
  %v1081 = vpop.permute.xlu0 %1080
  %1082 = vrot.lane.b32.xlu0 %v926, 56
  %v1083 = vpop.permute.xlu0 %1082
  %1084 = vrot.lane.b32.xlu0 %v927, 56
  %v1085 = vpop.permute.xlu0 %1084
  %1086 = vrot.lane.b32.xlu0 %v928, 56
  %v1087 = vpop.permute.xlu0 %1086
  %1088 = vrot.lane.b32.xlu0 %v929, 56
  %v1089 = vpop.permute.xlu0 %1088
  %1090 = vrot.lane.b32.xlu0 %v930, 56
  %v1091 = vpop.permute.xlu0 %1090
  %1092 = vrot.lane.b32.xlu0 %v931, 56
  %v1093 = vpop.permute.xlu0 %1092
  %1094 = vrot.lane.b32.xlu0 %v932, 56
  %v1095 = vpop.permute.xlu0 %1094
  %1096 = vrot.lane.b32.xlu0 %v933, 56
  %v1097 = vpop.permute.xlu0 %1096
  %1098 = vrot.lane.b32.xlu0 %v934, 56
  %v1099 = vpop.permute.xlu0 %1098
  %1100 = vrot.lane.b32.xlu0 %v935, 56
  %v1101 = vpop.permute.xlu0 %1100
  %1102 = vrot.lane.b32.xlu0 %v936, 56
  %v1103 = vpop.permute.xlu0 %1102
  %1104 = vrot.lane.b32.xlu0 %v937, 56
  %v1105 = vpop.permute.xlu0 %1104
  %vm1106 = vcmask 457728
  %v1107 = vsel %vm1106, %v1079, %v1081
  %v1108 = vsel %vm1106, %v1081, %v1083
  %v1109 = vsel %vm1106, %v1083, %v1085
  %v1110 = vsel %vm1106, %v1085, %v1087
  %v1111 = vsel %vm1106, %v1087, %v1089
  %v1112 = vsel %vm1106, %v1089, %v1091
  %v1113 = vsel %vm1106, %v1091, %v1093
  %v1114 = vsel %vm1106, %v1093, %v1095
  %v1115 = vsel %vm1106, %v1095, %v1097
  %v1116 = vsel %vm1106, %v1097, %v1099
  %v1117 = vsel %vm1106, %v1099, %v1101
  %v1118 = vsel %vm1106, %v1101, %v1103
  %v1119 = vsel %vm1106, %v1103, %v1105
  %v1134 = vmul.f32 %v701, %v1079
  %v1135 = vmul.f32 %v702, %v1107
  %v1136 = vmul.f32 %v703, %v1108
  %v1137 = vmul.f32 %v704, %v1109
  %v1138 = vmul.f32 %v705, %v1110
  %v1139 = vmul.f32 %v706, %v1111
  %v1140 = vmul.f32 %v707, %v1112
  %v1141 = vmul.f32 %v708, %v1113
  %v1142 = vmul.f32 %v709, %v1114
  %v1143 = vmul.f32 %v710, %v1115
  %v1144 = vmul.f32 %v711, %v1116
  %v1145 = vmul.f32 %v712, %v1117
  %v1146 = vmul.f32 %v713, %v1118
  %v1147 = vmul.f32 %v733, %v1119
  %1162 = vrot.lane.b32.xlu0 %v838, 112
  %v1163 = vpop.permute.xlu0 %1162
  %1164 = vrot.lane.b32.xlu0 %v839, 112
  %v1165 = vpop.permute.xlu0 %1164
  %1166 = vrot.lane.b32.xlu0 %v840, 112
  %v1167 = vpop.permute.xlu0 %1166
  %1168 = vrot.lane.b32.xlu0 %v841, 112
  %v1169 = vpop.permute.xlu0 %1168
  %1170 = vrot.lane.b32.xlu0 %v842, 112
  %v1171 = vpop.permute.xlu0 %1170
  %1172 = vrot.lane.b32.xlu0 %v843, 112
  %v1173 = vpop.permute.xlu0 %1172
  %1174 = vrot.lane.b32.xlu0 %v844, 112
  %v1175 = vpop.permute.xlu0 %1174
  %1176 = vrot.lane.b32.xlu0 %v845, 112
  %v1177 = vpop.permute.xlu0 %1176
  %1178 = vrot.lane.b32.xlu0 %v846, 112
  %v1179 = vpop.permute.xlu0 %1178
  %1180 = vrot.lane.b32.xlu0 %v847, 112
  %v1181 = vpop.permute.xlu0 %1180
  %1182 = vrot.lane.b32.xlu0 %v848, 112
  %v1183 = vpop.permute.xlu0 %1182
  %1184 = vrot.lane.b32.xlu0 %v849, 112
  %v1185 = vpop.permute.xlu0 %1184
  %1186 = vrot.lane.b32.xlu0 %v850, 112
  %v1187 = vpop.permute.xlu0 %1186
  %1188 = vrot.lane.b32.xlu0 %v851, 112
  %v1189 = vpop.permute.xlu0 %1188
  %vm1190 = vcmask 916480
  %v1191 = vsel %vm1190, %v1163, %v1165
  %v1192 = vsel %vm1190, %v1165, %v1167
  %v1193 = vsel %vm1190, %v1167, %v1169
  %v1194 = vsel %vm1190, %v1169, %v1171
  %v1195 = vsel %vm1190, %v1171, %v1173
  %v1196 = vsel %vm1190, %v1173, %v1175
  %v1197 = vsel %vm1190, %v1175, %v1177
  %v1198 = vsel %vm1190, %v1177, %v1179
  %v1199 = vsel %vm1190, %v1179, %v1181
  %v1200 = vsel %vm1190, %v1181, %v1183
  %v1201 = vsel %vm1190, %v1183, %v1185
  %v1202 = vsel %vm1190, %v1185, %v1187
  %v1203 = vsel %vm1190, %v1187, %v1189
  %1232 = vrot.lane.b32.xlu0 %v908, 96
  %v1233 = vpop.permute.xlu0 %1232
  %1234 = vrot.lane.b32.xlu0 %v909, 96
  %v1235 = vpop.permute.xlu0 %1234
  %1236 = vrot.lane.b32.xlu0 %v910, 96
  %v1237 = vpop.permute.xlu0 %1236
  %1238 = vrot.lane.b32.xlu0 %v911, 96
  %v1239 = vpop.permute.xlu0 %1238
  %1240 = vrot.lane.b32.xlu0 %v912, 96
  %v1241 = vpop.permute.xlu0 %1240
  %1242 = vrot.lane.b32.xlu0 %v913, 96
  %v1243 = vpop.permute.xlu0 %1242
  %1244 = vrot.lane.b32.xlu0 %v914, 96
  %v1245 = vpop.permute.xlu0 %1244
  %1246 = vrot.lane.b32.xlu0 %v915, 96
  %v1247 = vpop.permute.xlu0 %1246
  %1248 = vrot.lane.b32.xlu0 %v916, 96
  %v1249 = vpop.permute.xlu0 %1248
  %1250 = vrot.lane.b32.xlu0 %v917, 96
  %v1251 = vpop.permute.xlu0 %1250
  %1252 = vrot.lane.b32.xlu0 %v918, 96
  %v1253 = vpop.permute.xlu0 %1252
  %1254 = vrot.lane.b32.xlu0 %v919, 96
  %v1255 = vpop.permute.xlu0 %1254
  %1256 = vrot.lane.b32.xlu0 %v920, 96
  %v1257 = vpop.permute.xlu0 %1256
  %1258 = vrot.lane.b32.xlu0 %v921, 96
  %v1259 = vpop.permute.xlu0 %1258
  %v1260 = vsel %vm500, %v1233, %v1235
  %v1261 = vsel %vm500, %v1235, %v1237
  %v1262 = vsel %vm500, %v1237, %v1239
  %v1263 = vsel %vm500, %v1239, %v1241
  %v1264 = vsel %vm500, %v1241, %v1243
  %v1265 = vsel %vm500, %v1243, %v1245
  %v1266 = vsel %vm500, %v1245, %v1247
  %v1267 = vsel %vm500, %v1247, %v1249
  %v1268 = vsel %vm500, %v1249, %v1251
  %v1269 = vsel %vm500, %v1251, %v1253
  %v1270 = vsel %vm500, %v1253, %v1255
  %v1271 = vsel %vm500, %v1255, %v1257
  %v1272 = vsel %vm500, %v1257, %v1259
  %1288 = vrot.lane.b32.xlu0 %v731, 116
  %v1289 = vpop.permute.xlu0 %1288
  %1290 = vrot.lane.b32.xlu0 %v700, 116
  %v1291 = vpop.permute.xlu0 %1290
  %1292 = vrot.lane.b32.xlu0 %v701, 116
  %v1293 = vpop.permute.xlu0 %1292
  %1294 = vrot.lane.b32.xlu0 %v702, 116
  %v1295 = vpop.permute.xlu0 %1294
  %1296 = vrot.lane.b32.xlu0 %v703, 116
  %v1297 = vpop.permute.xlu0 %1296
  %1298 = vrot.lane.b32.xlu0 %v704, 116
  %v1299 = vpop.permute.xlu0 %1298
  %1300 = vrot.lane.b32.xlu0 %v705, 116
  %v1301 = vpop.permute.xlu0 %1300
  %1302 = vrot.lane.b32.xlu0 %v706, 116
  %v1303 = vpop.permute.xlu0 %1302
  %1304 = vrot.lane.b32.xlu0 %v707, 116
  %v1305 = vpop.permute.xlu0 %1304
  %1306 = vrot.lane.b32.xlu0 %v708, 116
  %v1307 = vpop.permute.xlu0 %1306
  %1308 = vrot.lane.b32.xlu0 %v709, 116
  %v1309 = vpop.permute.xlu0 %1308
  %1310 = vrot.lane.b32.xlu0 %v710, 116
  %v1311 = vpop.permute.xlu0 %1310
  %1312 = vrot.lane.b32.xlu0 %v711, 116
  %v1313 = vpop.permute.xlu0 %1312
  %1314 = vrot.lane.b32.xlu0 %v712, 116
  %v1315 = vpop.permute.xlu0 %1314
  %vm1316 = vcmask 949248
  %v1317 = vsel %vm1316, %v1289, %v1291
  %v1318 = vsel %vm1316, %v1291, %v1293
  %v1319 = vsel %vm1316, %v1293, %v1295
  %v1320 = vsel %vm1316, %v1295, %v1297
  %v1321 = vsel %vm1316, %v1297, %v1299
  %v1322 = vsel %vm1316, %v1299, %v1301
  %v1323 = vsel %vm1316, %v1301, %v1303
  %v1324 = vsel %vm1316, %v1303, %v1305
  %v1325 = vsel %vm1316, %v1305, %v1307
  %v1326 = vsel %vm1316, %v1307, %v1309
  %v1327 = vsel %vm1316, %v1309, %v1311
  %v1328 = vsel %vm1316, %v1311, %v1313
  %v1329 = vsel %vm1316, %v1313, %v1315
  %1344 = vrot.lane.b32.xlu0 %v700, 100
  %v1345 = vpop.permute.xlu0 %1344
  %1346 = vrot.lane.b32.xlu0 %v701, 100
  %v1347 = vpop.permute.xlu0 %1346
  %1348 = vrot.lane.b32.xlu0 %v702, 100
  %v1349 = vpop.permute.xlu0 %1348
  %1350 = vrot.lane.b32.xlu0 %v703, 100
  %v1351 = vpop.permute.xlu0 %1350
  %1352 = vrot.lane.b32.xlu0 %v704, 100
  %v1353 = vpop.permute.xlu0 %1352
  %1354 = vrot.lane.b32.xlu0 %v705, 100
  %v1355 = vpop.permute.xlu0 %1354
  %1356 = vrot.lane.b32.xlu0 %v706, 100
  %v1357 = vpop.permute.xlu0 %1356
  %1358 = vrot.lane.b32.xlu0 %v707, 100
  %v1359 = vpop.permute.xlu0 %1358
  %1360 = vrot.lane.b32.xlu0 %v708, 100
  %v1361 = vpop.permute.xlu0 %1360
  %1362 = vrot.lane.b32.xlu0 %v709, 100
  %v1363 = vpop.permute.xlu0 %1362
  %1364 = vrot.lane.b32.xlu0 %v710, 100
  %v1365 = vpop.permute.xlu0 %1364
  %1366 = vrot.lane.b32.xlu0 %v711, 100
  %v1367 = vpop.permute.xlu0 %1366
  %1368 = vrot.lane.b32.xlu0 %v712, 100
  %v1369 = vpop.permute.xlu0 %1368
  %1370 = vrot.lane.b32.xlu0 %v713, 100
  %v1371 = vpop.permute.xlu0 %1370
  %vm1372 = vcmask 818176
  %v1373 = vsel %vm1372, %v1345, %v1347
  %v1374 = vsel %vm1372, %v1347, %v1349
  %v1375 = vsel %vm1372, %v1349, %v1351
  %v1376 = vsel %vm1372, %v1351, %v1353
  %v1377 = vsel %vm1372, %v1353, %v1355
  %v1378 = vsel %vm1372, %v1355, %v1357
  %v1379 = vsel %vm1372, %v1357, %v1359
  %v1380 = vsel %vm1372, %v1359, %v1361
  %v1381 = vsel %vm1372, %v1361, %v1363
  %v1382 = vsel %vm1372, %v1363, %v1365
  %v1383 = vsel %vm1372, %v1365, %v1367
  %v1384 = vsel %vm1372, %v1367, %v1369
  %v1385 = vsel %vm1372, %v1369, %v1371
  %1401 = vrot.lane.b32.xlu0 %v701, 84
  %v1402 = vpop.permute.xlu0 %1401
  %1403 = vrot.lane.b32.xlu0 %v702, 84
  %v1404 = vpop.permute.xlu0 %1403
  %1405 = vrot.lane.b32.xlu0 %v703, 84
  %v1406 = vpop.permute.xlu0 %1405
  %1407 = vrot.lane.b32.xlu0 %v704, 84
  %v1408 = vpop.permute.xlu0 %1407
  %1409 = vrot.lane.b32.xlu0 %v705, 84
  %v1410 = vpop.permute.xlu0 %1409
  %1411 = vrot.lane.b32.xlu0 %v706, 84
  %v1412 = vpop.permute.xlu0 %1411
  %1413 = vrot.lane.b32.xlu0 %v707, 84
  %v1414 = vpop.permute.xlu0 %1413
  %1415 = vrot.lane.b32.xlu0 %v708, 84
  %v1416 = vpop.permute.xlu0 %1415
  %1417 = vrot.lane.b32.xlu0 %v709, 84
  %v1418 = vpop.permute.xlu0 %1417
  %1419 = vrot.lane.b32.xlu0 %v710, 84
  %v1420 = vpop.permute.xlu0 %1419
  %1421 = vrot.lane.b32.xlu0 %v711, 84
  %v1422 = vpop.permute.xlu0 %1421
  %1423 = vrot.lane.b32.xlu0 %v712, 84
  %v1424 = vpop.permute.xlu0 %1423
  %1425 = vrot.lane.b32.xlu0 %v713, 84
  %v1426 = vpop.permute.xlu0 %1425
  %1427 = vrot.lane.b32.xlu0 %v733, 84
  %v1428 = vpop.permute.xlu0 %1427
  %vm1429 = vcmask 687104
  %v1430 = vsel %vm1429, %v1402, %v1404
  %v1431 = vsel %vm1429, %v1404, %v1406
  %v1432 = vsel %vm1429, %v1406, %v1408
  %v1433 = vsel %vm1429, %v1408, %v1410
  %v1434 = vsel %vm1429, %v1410, %v1412
  %v1435 = vsel %vm1429, %v1412, %v1414
  %v1436 = vsel %vm1429, %v1414, %v1416
  %v1437 = vsel %vm1429, %v1416, %v1418
  %v1438 = vsel %vm1429, %v1418, %v1420
  %v1439 = vsel %vm1429, %v1420, %v1422
  %v1440 = vsel %vm1429, %v1422, %v1424
  %v1441 = vsel %vm1429, %v1424, %v1426
  %v1442 = vsel %vm1429, %v1426, %v1428
  %1471 = vrot.lane.b32.xlu0 %v994, 104
  %v1472 = vpop.permute.xlu0 %1471
  %1473 = vrot.lane.b32.xlu0 %v995, 104
  %v1474 = vpop.permute.xlu0 %1473
  %1475 = vrot.lane.b32.xlu0 %v996, 104
  %v1476 = vpop.permute.xlu0 %1475
  %1477 = vrot.lane.b32.xlu0 %v997, 104
  %v1478 = vpop.permute.xlu0 %1477
  %1479 = vrot.lane.b32.xlu0 %v998, 104
  %v1480 = vpop.permute.xlu0 %1479
  %1481 = vrot.lane.b32.xlu0 %v999, 104
  %v1482 = vpop.permute.xlu0 %1481
  %1483 = vrot.lane.b32.xlu0 %v1000, 104
  %v1484 = vpop.permute.xlu0 %1483
  %1485 = vrot.lane.b32.xlu0 %v1001, 104
  %v1486 = vpop.permute.xlu0 %1485
  %1487 = vrot.lane.b32.xlu0 %v1002, 104
  %v1488 = vpop.permute.xlu0 %1487
  %1489 = vrot.lane.b32.xlu0 %v1003, 104
  %v1490 = vpop.permute.xlu0 %1489
  %1491 = vrot.lane.b32.xlu0 %v1004, 104
  %v1492 = vpop.permute.xlu0 %1491
  %1493 = vrot.lane.b32.xlu0 %v1005, 104
  %v1494 = vpop.permute.xlu0 %1493
  %1495 = vrot.lane.b32.xlu0 %v1006, 104
  %v1496 = vpop.permute.xlu0 %1495
  %1497 = vrot.lane.b32.xlu0 %v1007, 104
  %v1498 = vpop.permute.xlu0 %1497
  %vm1499 = vcmask 850944
  %v1500 = vsel %vm1499, %v1472, %v1474
  %v1501 = vsel %vm1499, %v1474, %v1476
  %v1502 = vsel %vm1499, %v1476, %v1478
  %v1503 = vsel %vm1499, %v1478, %v1480
  %v1504 = vsel %vm1499, %v1480, %v1482
  %v1505 = vsel %vm1499, %v1482, %v1484
  %v1506 = vsel %vm1499, %v1484, %v1486
  %v1507 = vsel %vm1499, %v1486, %v1488
  %v1508 = vsel %vm1499, %v1488, %v1490
  %v1509 = vsel %vm1499, %v1490, %v1492
  %v1510 = vsel %vm1499, %v1492, %v1494
  %v1511 = vsel %vm1499, %v1494, %v1496
  %v1512 = vsel %vm1499, %v1496, %v1498
  %1541 = vrot.lane.b32.xlu0 %v1064, 88
  %v1542 = vpop.permute.xlu0 %1541
  %1543 = vrot.lane.b32.xlu0 %v1065, 88
  %v1544 = vpop.permute.xlu0 %1543
  %1545 = vrot.lane.b32.xlu0 %v1066, 88
  %v1546 = vpop.permute.xlu0 %1545
  %1547 = vrot.lane.b32.xlu0 %v1067, 88
  %v1548 = vpop.permute.xlu0 %1547
  %1549 = vrot.lane.b32.xlu0 %v1068, 88
  %v1550 = vpop.permute.xlu0 %1549
  %1551 = vrot.lane.b32.xlu0 %v1069, 88
  %v1552 = vpop.permute.xlu0 %1551
  %1553 = vrot.lane.b32.xlu0 %v1070, 88
  %v1554 = vpop.permute.xlu0 %1553
  %1555 = vrot.lane.b32.xlu0 %v1071, 88
  %v1556 = vpop.permute.xlu0 %1555
  %1557 = vrot.lane.b32.xlu0 %v1072, 88
  %v1558 = vpop.permute.xlu0 %1557
  %1559 = vrot.lane.b32.xlu0 %v1073, 88
  %v1560 = vpop.permute.xlu0 %1559
  %1561 = vrot.lane.b32.xlu0 %v1074, 88
  %v1562 = vpop.permute.xlu0 %1561
  %1563 = vrot.lane.b32.xlu0 %v1075, 88
  %v1564 = vpop.permute.xlu0 %1563
  %1565 = vrot.lane.b32.xlu0 %v1076, 88
  %v1566 = vpop.permute.xlu0 %1565
  %1567 = vrot.lane.b32.xlu0 %v1077, 88
  %v1568 = vpop.permute.xlu0 %1567
  %vm1569 = vcmask 719872
  %v1570 = vsel %vm1569, %v1542, %v1544
  %v1571 = vsel %vm1569, %v1544, %v1546
  %v1572 = vsel %vm1569, %v1546, %v1548
  %v1573 = vsel %vm1569, %v1548, %v1550
  %v1574 = vsel %vm1569, %v1550, %v1552
  %v1575 = vsel %vm1569, %v1552, %v1554
  %v1576 = vsel %vm1569, %v1554, %v1556
  %v1577 = vsel %vm1569, %v1556, %v1558
  %v1578 = vsel %vm1569, %v1558, %v1560
  %v1579 = vsel %vm1569, %v1560, %v1562
  %v1580 = vsel %vm1569, %v1562, %v1564
  %v1581 = vsel %vm1569, %v1564, %v1566
  %v1582 = vsel %vm1569, %v1566, %v1568
  %1611 = vrot.lane.b32.xlu0 %v1134, 72
  %v1612 = vpop.permute.xlu0 %1611
  %1613 = vrot.lane.b32.xlu0 %v1135, 72
  %v1614 = vpop.permute.xlu0 %1613
  %1615 = vrot.lane.b32.xlu0 %v1136, 72
  %v1616 = vpop.permute.xlu0 %1615
  %1617 = vrot.lane.b32.xlu0 %v1137, 72
  %v1618 = vpop.permute.xlu0 %1617
  %1619 = vrot.lane.b32.xlu0 %v1138, 72
  %v1620 = vpop.permute.xlu0 %1619
  %1621 = vrot.lane.b32.xlu0 %v1139, 72
  %v1622 = vpop.permute.xlu0 %1621
  %1623 = vrot.lane.b32.xlu0 %v1140, 72
  %v1624 = vpop.permute.xlu0 %1623
  %1625 = vrot.lane.b32.xlu0 %v1141, 72
  %v1626 = vpop.permute.xlu0 %1625
  %1627 = vrot.lane.b32.xlu0 %v1142, 72
  %v1628 = vpop.permute.xlu0 %1627
  %1629 = vrot.lane.b32.xlu0 %v1143, 72
  %v1630 = vpop.permute.xlu0 %1629
  %1631 = vrot.lane.b32.xlu0 %v1144, 72
  %v1632 = vpop.permute.xlu0 %1631
  %1633 = vrot.lane.b32.xlu0 %v1145, 72
  %v1634 = vpop.permute.xlu0 %1633
  %1635 = vrot.lane.b32.xlu0 %v1146, 72
  %v1636 = vpop.permute.xlu0 %1635
  %1637 = vrot.lane.b32.xlu0 %v1147, 72
  %v1638 = vpop.permute.xlu0 %1637
  %vm1639 = vcmask 588800
  %v1640 = vsel %vm1639, %v1612, %v1614
  %v1641 = vsel %vm1639, %v1614, %v1616
  %v1642 = vsel %vm1639, %v1616, %v1618
  %v1643 = vsel %vm1639, %v1618, %v1620
  %v1644 = vsel %vm1639, %v1620, %v1622
  %v1645 = vsel %vm1639, %v1622, %v1624
  %v1646 = vsel %vm1639, %v1624, %v1626
  %v1647 = vsel %vm1639, %v1626, %v1628
  %v1648 = vsel %vm1639, %v1628, %v1630
  %v1649 = vsel %vm1639, %v1630, %v1632
  %v1650 = vsel %vm1639, %v1632, %v1634
  %v1651 = vsel %vm1639, %v1634, %v1636
  %v1652 = vsel %vm1639, %v1636, %v1638
  %v1667 = vld [vmem:[%s2] sm:$0xff]
  %v1669 = vsel %vm1639, %v1667, 0
  %1671 = vmatpush.msra.mxu0 0.0
  %1672 = vmatpush.msra.mxu0 0.0
  %1673 = vmatpush.msra.mxu0 0.0
  %1674 = vmatpush.msra.mxu0 0.0
  %1675 = vmatpush.msra.mxu0 0.0
  %1676 = vmatpush.msra.mxu0 0.0
  %1677 = vmatpush.msra.mxu0 0.0
  %1678 = vmatpush.msra.mxu0 %v1640
  %1679 = vmatpush.msra.mxu0 %v1570
  %1680 = vmatpush.msra.mxu0 %v1500
  %1681 = vmatpush.msra.mxu0 %v1430
  %1682 = vmatpush.msra.mxu0 %v1373
  %1683 = vmatpush.msra.mxu0 %v1317
  %1684 = vmatpush.msra.mxu0 %v1260
  %1685 = vmatpush.msra.mxu0 %v1191
  %1686 = vmatpush.msra.mxu0 %v768
  %1687 = vmatmul.f32.gmra.mxu0 %v1669
  %v1688 = vpop.f32.mrf.mxu0
  %v1689 = vadd.f32 0.0, %v1688
  %1690 = vdwg.mxu0
  %1691 = vmatpush.msra.mxu0 0.0
  %1692 = vmatpush.msra.mxu0 0.0
  %1693 = vmatpush.msra.mxu0 0.0
  %1694 = vmatpush.msra.mxu0 0.0
  %1695 = vmatpush.msra.mxu0 0.0
  %1696 = vmatpush.msra.mxu0 0.0
  %1697 = vmatpush.msra.mxu0 0.0
  %1698 = vmatpush.msra.mxu0 %v1641
  %1699 = vmatpush.msra.mxu0 %v1571
  %1700 = vmatpush.msra.mxu0 %v1501
  %1701 = vmatpush.msra.mxu0 %v1431
  %1702 = vmatpush.msra.mxu0 %v1374
  %1703 = vmatpush.msra.mxu0 %v1318
  %1704 = vmatpush.msra.mxu0 %v1261
  %1705 = vmatpush.msra.mxu0 %v1192
  %1706 = vmatpush.msra.mxu0 %v769
  %1707 = vmatmul.f32.gmra.mxu0 %v1669
  %v1708 = vpop.f32.mrf.mxu0
  %v1709 = vadd.f32 0.0, %v1708
  %1710 = vdwg.mxu0
  %1711 = vmatpush.msra.mxu0 0.0
  %1712 = vmatpush.msra.mxu0 0.0
  %1713 = vmatpush.msra.mxu0 0.0
  %1714 = vmatpush.msra.mxu0 0.0
  %1715 = vmatpush.msra.mxu0 0.0
  %1716 = vmatpush.msra.mxu0 0.0
  %1717 = vmatpush.msra.mxu0 0.0
  %1718 = vmatpush.msra.mxu0 %v1642
  %1719 = vmatpush.msra.mxu0 %v1572
  %1720 = vmatpush.msra.mxu0 %v1502
  %1721 = vmatpush.msra.mxu0 %v1432
  %1722 = vmatpush.msra.mxu0 %v1375
  %1723 = vmatpush.msra.mxu0 %v1319
  %1724 = vmatpush.msra.mxu0 %v1262
  %1725 = vmatpush.msra.mxu0 %v1193
  %1726 = vmatpush.msra.mxu0 %v770
  %1727 = vmatmul.f32.gmra.mxu0 %v1669
  %v1728 = vpop.f32.mrf.mxu0
  %v1729 = vadd.f32 0.0, %v1728
  %1730 = vdwg.mxu0
  %1731 = vmatpush.msra.mxu0 0.0
  %1732 = vmatpush.msra.mxu0 0.0
  %1733 = vmatpush.msra.mxu0 0.0
  %1734 = vmatpush.msra.mxu0 0.0
  %1735 = vmatpush.msra.mxu0 0.0
  %1736 = vmatpush.msra.mxu0 0.0
  %1737 = vmatpush.msra.mxu0 0.0
  %1738 = vmatpush.msra.mxu0 %v1643
  %1739 = vmatpush.msra.mxu0 %v1573
  %1740 = vmatpush.msra.mxu0 %v1503
  %1741 = vmatpush.msra.mxu0 %v1433
  %1742 = vmatpush.msra.mxu0 %v1376
  %1743 = vmatpush.msra.mxu0 %v1320
  %1744 = vmatpush.msra.mxu0 %v1263
  %1745 = vmatpush.msra.mxu0 %v1194
  %1746 = vmatpush.msra.mxu0 %v771
  %1747 = vmatmul.f32.gmra.mxu0 %v1669
  %v1748 = vpop.f32.mrf.mxu0
  %v1749 = vadd.f32 0.0, %v1748
  %1750 = vdwg.mxu0
  %1751 = vmatpush.msra.mxu0 0.0
  %1752 = vmatpush.msra.mxu0 0.0
  %1753 = vmatpush.msra.mxu0 0.0
  %1754 = vmatpush.msra.mxu0 0.0
  %1755 = vmatpush.msra.mxu0 0.0
  %1756 = vmatpush.msra.mxu0 0.0
  %1757 = vmatpush.msra.mxu0 0.0
  %1758 = vmatpush.msra.mxu0 %v1644
  %1759 = vmatpush.msra.mxu0 %v1574
  %1760 = vmatpush.msra.mxu0 %v1504
  %1761 = vmatpush.msra.mxu0 %v1434
  %1762 = vmatpush.msra.mxu0 %v1377
  %1763 = vmatpush.msra.mxu0 %v1321
  %1764 = vmatpush.msra.mxu0 %v1264
  %1765 = vmatpush.msra.mxu0 %v1195
  %1766 = vmatpush.msra.mxu0 %v772
  %1767 = vmatmul.f32.gmra.mxu0 %v1669
  %v1768 = vpop.f32.mrf.mxu0
  %v1769 = vadd.f32 0.0, %v1768
  %1770 = vdwg.mxu0
  %1771 = vmatpush.msra.mxu0 0.0
  %1772 = vmatpush.msra.mxu0 0.0
  %1773 = vmatpush.msra.mxu0 0.0
  %1774 = vmatpush.msra.mxu0 0.0
  %1775 = vmatpush.msra.mxu0 0.0
  %1776 = vmatpush.msra.mxu0 0.0
  %1777 = vmatpush.msra.mxu0 0.0
  %1778 = vmatpush.msra.mxu0 %v1645
  %1779 = vmatpush.msra.mxu0 %v1575
  %1780 = vmatpush.msra.mxu0 %v1505
  %1781 = vmatpush.msra.mxu0 %v1435
  %1782 = vmatpush.msra.mxu0 %v1378
  %1783 = vmatpush.msra.mxu0 %v1322
  %1784 = vmatpush.msra.mxu0 %v1265
  %1785 = vmatpush.msra.mxu0 %v1196
  %1786 = vmatpush.msra.mxu0 %v773
  %1787 = vmatmul.f32.gmra.mxu0 %v1669
  %v1788 = vpop.f32.mrf.mxu0
  %v1789 = vadd.f32 0.0, %v1788
  %1790 = vdwg.mxu0
  %1791 = vmatpush.msra.mxu0 0.0
  %1792 = vmatpush.msra.mxu0 0.0
  %1793 = vmatpush.msra.mxu0 0.0
  %1794 = vmatpush.msra.mxu0 0.0
  %1795 = vmatpush.msra.mxu0 0.0
  %1796 = vmatpush.msra.mxu0 0.0
  %1797 = vmatpush.msra.mxu0 0.0
  %1798 = vmatpush.msra.mxu0 %v1646
  %1799 = vmatpush.msra.mxu0 %v1576
  %1800 = vmatpush.msra.mxu0 %v1506
  %1801 = vmatpush.msra.mxu0 %v1436
  %1802 = vmatpush.msra.mxu0 %v1379
  %1803 = vmatpush.msra.mxu0 %v1323
  %1804 = vmatpush.msra.mxu0 %v1266
  %1805 = vmatpush.msra.mxu0 %v1197
  %1806 = vmatpush.msra.mxu0 %v774
  %1807 = vmatmul.f32.gmra.mxu0 %v1669
  %v1808 = vpop.f32.mrf.mxu0
  %v1809 = vadd.f32 0.0, %v1808
  %1810 = vdwg.mxu0
  %1811 = vmatpush.msra.mxu0 0.0
  %1812 = vmatpush.msra.mxu0 0.0
  %1813 = vmatpush.msra.mxu0 0.0
  %1814 = vmatpush.msra.mxu0 0.0
  %1815 = vmatpush.msra.mxu0 0.0
  %1816 = vmatpush.msra.mxu0 0.0
  %1817 = vmatpush.msra.mxu0 0.0
  %1818 = vmatpush.msra.mxu0 %v1647
  %1819 = vmatpush.msra.mxu0 %v1577
  %1820 = vmatpush.msra.mxu0 %v1507
  %1821 = vmatpush.msra.mxu0 %v1437
  %1822 = vmatpush.msra.mxu0 %v1380
  %1823 = vmatpush.msra.mxu0 %v1324
  %1824 = vmatpush.msra.mxu0 %v1267
  %1825 = vmatpush.msra.mxu0 %v1198
  %1826 = vmatpush.msra.mxu0 %v775
  %1827 = vmatmul.f32.gmra.mxu0 %v1669
  %v1828 = vpop.f32.mrf.mxu0
  %v1829 = vadd.f32 0.0, %v1828
  %1830 = vdwg.mxu0
  %1831 = vmatpush.msra.mxu0 0.0
  %1832 = vmatpush.msra.mxu0 0.0
  %1833 = vmatpush.msra.mxu0 0.0
  %1834 = vmatpush.msra.mxu0 0.0
  %1835 = vmatpush.msra.mxu0 0.0
  %1836 = vmatpush.msra.mxu0 0.0
  %1837 = vmatpush.msra.mxu0 0.0
  %1838 = vmatpush.msra.mxu0 %v1648
  %1839 = vmatpush.msra.mxu0 %v1578
  %1840 = vmatpush.msra.mxu0 %v1508
  %1841 = vmatpush.msra.mxu0 %v1438
  %1842 = vmatpush.msra.mxu0 %v1381
  %1843 = vmatpush.msra.mxu0 %v1325
  %1844 = vmatpush.msra.mxu0 %v1268
  %1845 = vmatpush.msra.mxu0 %v1199
  %1846 = vmatpush.msra.mxu0 %v776
  %1847 = vmatmul.f32.gmra.mxu0 %v1669
  %v1848 = vpop.f32.mrf.mxu0
  %v1849 = vadd.f32 0.0, %v1848
  %1850 = vdwg.mxu0
  %1851 = vmatpush.msra.mxu0 0.0
  %1852 = vmatpush.msra.mxu0 0.0
  %1853 = vmatpush.msra.mxu0 0.0
  %1854 = vmatpush.msra.mxu0 0.0
  %1855 = vmatpush.msra.mxu0 0.0
  %1856 = vmatpush.msra.mxu0 0.0
  %1857 = vmatpush.msra.mxu0 0.0
  %1858 = vmatpush.msra.mxu0 %v1649
  %1859 = vmatpush.msra.mxu0 %v1579
  %1860 = vmatpush.msra.mxu0 %v1509
  %1861 = vmatpush.msra.mxu0 %v1439
  %1862 = vmatpush.msra.mxu0 %v1382
  %1863 = vmatpush.msra.mxu0 %v1326
  %1864 = vmatpush.msra.mxu0 %v1269
  %1865 = vmatpush.msra.mxu0 %v1200
  %1866 = vmatpush.msra.mxu0 %v777
  %1867 = vmatmul.f32.gmra.mxu0 %v1669
  %v1868 = vpop.f32.mrf.mxu0
  %v1869 = vadd.f32 0.0, %v1868
  %1870 = vdwg.mxu0
  %1871 = vmatpush.msra.mxu0 0.0
  %1872 = vmatpush.msra.mxu0 0.0
  %1873 = vmatpush.msra.mxu0 0.0
  %1874 = vmatpush.msra.mxu0 0.0
  %1875 = vmatpush.msra.mxu0 0.0
  %1876 = vmatpush.msra.mxu0 0.0
  %1877 = vmatpush.msra.mxu0 0.0
  %1878 = vmatpush.msra.mxu0 %v1650
  %1879 = vmatpush.msra.mxu0 %v1580
  %1880 = vmatpush.msra.mxu0 %v1510
  %1881 = vmatpush.msra.mxu0 %v1440
  %1882 = vmatpush.msra.mxu0 %v1383
  %1883 = vmatpush.msra.mxu0 %v1327
  %1884 = vmatpush.msra.mxu0 %v1270
  %1885 = vmatpush.msra.mxu0 %v1201
  %1886 = vmatpush.msra.mxu0 %v778
  %1887 = vmatmul.f32.gmra.mxu0 %v1669
  %v1888 = vpop.f32.mrf.mxu0
  %v1889 = vadd.f32 0.0, %v1888
  %1890 = vdwg.mxu0
  %1891 = vmatpush.msra.mxu0 0.0
  %1892 = vmatpush.msra.mxu0 0.0
  %1893 = vmatpush.msra.mxu0 0.0
  %1894 = vmatpush.msra.mxu0 0.0
  %1895 = vmatpush.msra.mxu0 0.0
  %1896 = vmatpush.msra.mxu0 0.0
  %1897 = vmatpush.msra.mxu0 0.0
  %1898 = vmatpush.msra.mxu0 %v1651
  %1899 = vmatpush.msra.mxu0 %v1581
  %1900 = vmatpush.msra.mxu0 %v1511
  %1901 = vmatpush.msra.mxu0 %v1441
  %1902 = vmatpush.msra.mxu0 %v1384
  %1903 = vmatpush.msra.mxu0 %v1328
  %1904 = vmatpush.msra.mxu0 %v1271
  %1905 = vmatpush.msra.mxu0 %v1202
  %1906 = vmatpush.msra.mxu0 %v779
  %1907 = vmatmul.f32.gmra.mxu0 %v1669
  %v1908 = vpop.f32.mrf.mxu0
  %v1909 = vadd.f32 0.0, %v1908
  %1910 = vdwg.mxu0
  %1911 = vmatpush.msra.mxu0 0.0
  %1912 = vmatpush.msra.mxu0 0.0
  %1913 = vmatpush.msra.mxu0 0.0
  %1914 = vmatpush.msra.mxu0 0.0
  %1915 = vmatpush.msra.mxu0 0.0
  %1916 = vmatpush.msra.mxu0 0.0
  %1917 = vmatpush.msra.mxu0 0.0
  %1918 = vmatpush.msra.mxu0 %v1652
  %1919 = vmatpush.msra.mxu0 %v1582
  %1920 = vmatpush.msra.mxu0 %v1512
  %1921 = vmatpush.msra.mxu0 %v1442
  %1922 = vmatpush.msra.mxu0 %v1385
  %1923 = vmatpush.msra.mxu0 %v1329
  %1924 = vmatpush.msra.mxu0 %v1272
  %1925 = vmatpush.msra.mxu0 %v1203
  %1926 = vmatpush.msra.mxu0 %v780
  %1927 = vmatmul.f32.gmra.mxu0 %v1669
  %v1928 = vpop.f32.mrf.mxu0
  %v1929 = vadd.f32 0.0, %v1928
  %1930 = vdwg.mxu0
  %1931 = vmatpush.msra.mxu0 0.0
  %1932 = vmatpush.msra.mxu0 0.0
  %1933 = vmatpush.msra.mxu0 0.0
  %1934 = vmatpush.msra.mxu0 0.0
  %1935 = vmatpush.msra.mxu0 0.0
  %1936 = vmatpush.msra.mxu0 0.0
  %1937 = vmatpush.msra.mxu0 0.0
  %1938 = vmatpush.msra.mxu0 %v1638
  %1939 = vmatpush.msra.mxu0 %v1568
  %1940 = vmatpush.msra.mxu0 %v1498
  %1941 = vmatpush.msra.mxu0 %v1428
  %1942 = vmatpush.msra.mxu0 %v1371
  %1943 = vmatpush.msra.mxu0 %v1315
  %1944 = vmatpush.msra.mxu0 %v1259
  %1945 = vmatpush.msra.mxu0 %v1189
  %1946 = vmatpush.msra.mxu0 %v781
  %1947 = vmatmul.f32.gmra.mxu0 %v1669
  %v1948 = vpop.f32.mrf.mxu0
  %v1949 = vadd.f32 0.0, %v1948
  %1950 = vdwg.mxu0
  %v1951 = vadd.f32 %v1689, %v1709
  %v1952 = vadd.f32 %v1951, %v1729
  %v1953 = vadd.f32 %v1952, %v1749
  %v1954 = vadd.f32 %v1953, %v1769
  %v1955 = vadd.f32 %v1954, %v1789
  %v1956 = vadd.f32 %v1955, %v1809
  %v1957 = vadd.f32 %v1956, %v1829
  %v1958 = vadd.f32 %v1957, %v1849
  %v1959 = vadd.f32 %v1958, %v1869
  %v1960 = vadd.f32 %v1959, %v1889
  %v1961 = vadd.f32 %v1960, %v1909
  %v1962 = vadd.f32 %v1961, %v1929
  %vm1963 = vcmask 523264
  %v1964 = vsel %vm1963, %v1949, 0.0
  %v1965 = vadd.f32 %v1962, %v1964
  %1966 = vadd.xlane.f32.xlu0 %v1965
  %v1967 = vpop.xlane.xlu0 %1966
  %v1968 = vrcp.pop 1728.0
  %v1969 = vmul.f32 1728.0, %v1968
  %v1970 = vsub.f32 1.0, %v1969
  %v1971 = vmul.f32 %v1968, %v1970
  %v1972 = vadd.f32 %v1968, %v1971
  %vm1973 = vweird.f32 %v1968
  %v1974 = vsel %vm1973, %v1968, %v1972
  %v1975 = vmul.f32 %v1967, %v1974
  %v1976 = vsub.f32 %v1689, %v1975
  %v1977 = vsub.f32 %v1709, %v1975
  %v1978 = vsub.f32 %v1729, %v1975
  %v1979 = vsub.f32 %v1749, %v1975
  %v1980 = vsub.f32 %v1769, %v1975
  %v1981 = vsub.f32 %v1789, %v1975
  %v1982 = vsub.f32 %v1809, %v1975
  %v1983 = vsub.f32 %v1829, %v1975
  %v1984 = vsub.f32 %v1849, %v1975
  %v1985 = vsub.f32 %v1869, %v1975
  %v1986 = vsub.f32 %v1889, %v1975
  %v1987 = vsub.f32 %v1909, %v1975
  %v1988 = vsub.f32 %v1929, %v1975
  %v1989 = vsub.f32 %v1949, %v1975
  %v1990 = vmul.f32 %v1976, %v1976
  %v1991 = vmul.f32 %v1977, %v1977
  %v1992 = vmul.f32 %v1978, %v1978
  %v1993 = vmul.f32 %v1979, %v1979
  %v1994 = vmul.f32 %v1980, %v1980
  %v1995 = vmul.f32 %v1981, %v1981
  %v1996 = vmul.f32 %v1982, %v1982
  %v1997 = vmul.f32 %v1983, %v1983
  %v1998 = vmul.f32 %v1984, %v1984
  %v1999 = vmul.f32 %v1985, %v1985
  %v2000 = vmul.f32 %v1986, %v1986
  %v2001 = vmul.f32 %v1987, %v1987
  %v2002 = vmul.f32 %v1988, %v1988
  %v2003 = vmul.f32 %v1989, %v1989
  %v2004 = vadd.f32 %v1990, %v1991
  %v2005 = vadd.f32 %v2004, %v1992
  %v2006 = vadd.f32 %v2005, %v1993
  %v2007 = vadd.f32 %v2006, %v1994
  %v2008 = vadd.f32 %v2007, %v1995
  %v2009 = vadd.f32 %v2008, %v1996
  %v2010 = vadd.f32 %v2009, %v1997
  %v2011 = vadd.f32 %v2010, %v1998
  %v2012 = vadd.f32 %v2011, %v1999
  %v2013 = vadd.f32 %v2012, %v2000
  %v2014 = vadd.f32 %v2013, %v2001
  %v2015 = vadd.f32 %v2014, %v2002
  %v2016 = vsel %vm1963, %v2003, 0.0
  %v2017 = vadd.f32 %v2015, %v2016
  %2018 = vadd.xlane.f32.xlu0 %v2017
  %v2019 = vpop.xlane.xlu0 %2018
  %v2020 = vmul.f32 %v2019, %v1974
  %v2021 = vadd.f32 %v2020, 1e-05
  %v2022 = vrsqrt.pop %v2021
  %v2023 = vmul.f32 %v2022, %v2021
  %v2024 = vmul.f32 %v2023, %v2022
  %v2025 = vmul.f32 0.5, %v2024
  %v2026 = vsub.f32 1.5, %v2025
  %v2027 = vmul.f32 %v2022, %v2026
  %vm2028 = vweird.f32 %v2021
  %vm2029 = vweird.f32 %v2022
  %vm2030 = vmor %vm2028, %vm2029
  %v2031 = vsel %vm2030, %v2022, %v2027
  %v2032 = vmul.f32 %v1976, %v2031
  %v2033 = vmul.f32 %v1977, %v2031
  %v2034 = vmul.f32 %v1978, %v2031
  %v2035 = vmul.f32 %v1979, %v2031
  %v2036 = vmul.f32 %v1980, %v2031
  %v2037 = vmul.f32 %v1981, %v2031
  %v2038 = vmul.f32 %v1982, %v2031
  %v2039 = vmul.f32 %v1983, %v2031
  %v2040 = vmul.f32 %v1984, %v2031
  %v2041 = vmul.f32 %v1985, %v2031
  %v2042 = vmul.f32 %v1986, %v2031
  %v2043 = vmul.f32 %v1987, %v2031
  %v2044 = vmul.f32 %v1988, %v2031
  %v2045 = vmul.f32 %v1989, %v2031
  %v2046 = vld [vmem:[%s5] sm:$0xff]
  %2048 = vset.pattern.permute.xlu0 0
  %2049 = vperm.xlu0 %2048, %v2046
  %v2050 = vpop.permute.xlu0 %2049
  %v2052 = vmul.f32 %v2032, %v2050
  %v2053 = vmul.f32 %v2033, %v2050
  %v2054 = vmul.f32 %v2034, %v2050
  %v2055 = vmul.f32 %v2035, %v2050
  %v2056 = vmul.f32 %v2036, %v2050
  %v2057 = vmul.f32 %v2037, %v2050
  %v2058 = vmul.f32 %v2038, %v2050
  %v2059 = vmul.f32 %v2039, %v2050
  %v2060 = vmul.f32 %v2040, %v2050
  %v2061 = vmul.f32 %v2041, %v2050
  %v2062 = vmul.f32 %v2042, %v2050
  %v2063 = vmul.f32 %v2043, %v2050
  %v2064 = vmul.f32 %v2044, %v2050
  %v2065 = vmul.f32 %v2045, %v2050
  %v2066 = vld [vmem:[%s6] sm:$0xff]
  %2068 = vset.pattern.permute.xlu0 0
  %2069 = vperm.xlu0 %2068, %v2066
  %v2070 = vpop.permute.xlu0 %2069
  %v2072 = vadd.f32 %v2052, %v2070
  %v2073 = vadd.f32 %v2053, %v2070
  %v2074 = vadd.f32 %v2054, %v2070
  %v2075 = vadd.f32 %v2055, %v2070
  %v2076 = vadd.f32 %v2056, %v2070
  %v2077 = vadd.f32 %v2057, %v2070
  %v2078 = vadd.f32 %v2058, %v2070
  %v2079 = vadd.f32 %v2059, %v2070
  %v2080 = vadd.f32 %v2060, %v2070
  %v2081 = vadd.f32 %v2061, %v2070
  %v2082 = vadd.f32 %v2062, %v2070
  %v2083 = vadd.f32 %v2063, %v2070
  %v2084 = vadd.f32 %v2064, %v2070
  %v2085 = vadd.f32 %v2065, %v2070
  %v2086 = vmax.f32 %v2072, 0.0
  %v2087 = vmax.f32 %v2073, 0.0
  %v2088 = vmax.f32 %v2074, 0.0
  %v2089 = vmax.f32 %v2075, 0.0
  %v2090 = vmax.f32 %v2076, 0.0
  %v2091 = vmax.f32 %v2077, 0.0
  %v2092 = vmax.f32 %v2078, 0.0
  %v2093 = vmax.f32 %v2079, 0.0
  %v2094 = vmax.f32 %v2080, 0.0
  %v2095 = vmax.f32 %v2081, 0.0
  %v2096 = vmax.f32 %v2082, 0.0
  %v2097 = vmax.f32 %v2083, 0.0
  %v2098 = vmax.f32 %v2084, 0.0
  %v2099 = vmax.f32 %v2085, 0.0
  %2100 = vst [vmem:[%s9] sm:$0xff] %v2086
  %2101 = vst [vmem:[%s9 + $0x8] sm:$0xff] %v2087
  %2102 = vst [vmem:[%s9 + $0x10] sm:$0xff] %v2088
  %2103 = vst [vmem:[%s9 + $0x18] sm:$0xff] %v2089
  %2104 = vst [vmem:[%s9 + $0x20] sm:$0xff] %v2090
  %2105 = vst [vmem:[%s9 + $0x28] sm:$0xff] %v2091
  %2106 = vst [vmem:[%s9 + $0x30] sm:$0xff] %v2092
  %2107 = vst [vmem:[%s9 + $0x38] sm:$0xff] %v2093
  %2108 = vst [vmem:[%s9 + $0x40] sm:$0xff] %v2094
  %2109 = vst [vmem:[%s9 + $0x48] sm:$0xff] %v2095
  %2110 = vst [vmem:[%s9 + $0x50] sm:$0xff] %v2096
  %2111 = vst [vmem:[%s9 + $0x58] sm:$0xff] %v2097
  %2112 = vst [vmem:[%s9 + $0x60] sm:$0xff] %v2098
  %2113 = vst.msk [vmem:[%s9 + $0x68] sm:$0xff] %vm1963, %v2099
  // Predicated region
  $region38: #{double_conv_forward.1} parent=0 // pred_check
    _
  $region39: #{double_conv_forward.1} parent=0 // pred_check_branch
    %2115 = sbr.rel (0) target = $region41
  $region40: #{double_conv_forward.1} parent=0 // pred_region
    _
  $region41: #{double_conv_forward.1} parent=0 // pred_fallthru
    _
  // Predicated region
  $region42: #{double_conv_forward.1} parent=0 // pred_check
    _
  $region43: #{double_conv_forward.1} parent=0 // pred_check_branch
    %2117 = sbr.rel (0) target = $region45
  $region44: #{double_conv_forward.1} parent=0 // pred_region
    _
  $region45: #{double_conv_forward.1} parent=0 // pred_fallthru
    _

</llo_original>
